<compile_context>
chip_gen: v5e
topology: v5e:2x2
jax: 0.10.0
libtpu: 0.0.40
codegen_flags: <defaults>
</compile_context>

<pallas_src>
import math
from functools import partial

import jax
import jax.numpy as jnp
from jax.experimental import pallas as pl
from jax.experimental.pallas import tpu as pltpu


def _attention_kernel(x_ref, wq_ref, wk_ref, wv_ref, wp_ref, bp_ref, o_ref,
                      *, num_heads):
    """One batch element per grid step.

    x_ref:  (1, N, C)        activations for this batch element
    wq/wk/wv_ref: (H, C, hd) per-head projection weights (scale folded into wq)
    wp_ref: (H, hd, C)       per-head slices of the output projection
    bp_ref: (1, C)           output-projection bias
    o_ref:  (1, N, C)        output
    """
    x = x_ref[0]                                            # (N, C)
    out = jnp.zeros(o_ref.shape[1:], dtype=jnp.float32)     # (N, C) accumulator

    # Static unrolled loop over heads (num_heads is a Python int).
    for h in range(num_heads):
        q = jnp.dot(x, wq_ref[h], preferred_element_type=jnp.float32)   # (N, hd)
        k = jnp.dot(x, wk_ref[h], preferred_element_type=jnp.float32)   # (N, hd)
        v = jnp.dot(x, wv_ref[h], preferred_element_type=jnp.float32)   # (N, hd)

        # scores = q @ k^T  (scale already folded into wq) -> (N, N)
        s = jax.lax.dot_general(q, k, (((1,), (1,)), ((), ())),
                                preferred_element_type=jnp.float32)

        # numerically-stable softmax over keys
        s = s - jnp.max(s, axis=-1, keepdims=True)
        p = jnp.exp(s)
        p = p / jnp.sum(p, axis=-1, keepdims=True)

        ctx = jnp.dot(p, v, preferred_element_type=jnp.float32)          # (N, hd)

        # Output projection, accumulated head-by-head:
        #   ctx_full @ Wproj == sum_h ctx_h @ Wproj[h*hd:(h+1)*hd, :]
        out = out + jnp.dot(ctx, wp_ref[h], preferred_element_type=jnp.float32)

    o_ref[0] = (out + bp_ref[...]).astype(o_ref.dtype)


def attention_forward(x, w_qkv, w_proj, b_proj, num_heads):
    """x: (B, N, C); w_qkv: (C, 3C); w_proj: (C, C); b_proj: (C,)."""
    B, N, C = x.shape
    hd = C // num_heads
    scale = math.sqrt(hd)  # module default: qk_scale or sqrt(head_dim)

    # --- one-time static parameter prep (weights only; never touches x) -----
    # Per-head weight slabs; attention scale folded into the Q weights.
    wq = (w_qkv[:, 0 * C:1 * C].reshape(C, num_heads, hd)
          .transpose(1, 0, 2) * scale)                         # (H, C, hd)
    wk = w_qkv[:, 1 * C:2 * C].reshape(C, num_heads, hd).transpose(1, 0, 2)
    wv = w_qkv[:, 2 * C:3 * C].reshape(C, num_heads, hd).transpose(1, 0, 2)
    wp = w_proj.reshape(num_heads, hd, C)                      # (H, hd, C)
    bp = b_proj.reshape(1, C)

    kernel = partial(_attention_kernel, num_heads=num_heads)

    return pl.pallas_call(
        kernel,
        out_shape=jax.ShapeDtypeStruct((B, N, C), x.dtype),
        grid=(B,),
        in_specs=[
            pl.BlockSpec((1, N, C), lambda b: (b, 0, 0)),
            pl.BlockSpec((num_heads, C, hd), lambda b: (0, 0, 0)),
            pl.BlockSpec((num_heads, C, hd), lambda b: (0, 0, 0)),
            pl.BlockSpec((num_heads, C, hd), lambda b: (0, 0, 0)),
            pl.BlockSpec((num_heads, hd, C), lambda b: (0, 0, 0)),
            pl.BlockSpec((1, C), lambda b: (0, 0)),
        ],
        out_specs=pl.BlockSpec((1, N, C), lambda b: (b, 0, 0)),
        compiler_params=pltpu.CompilerParams(
            dimension_semantics=("parallel",),   # shard batch across TCs on v7x
        ),
    )(x, wq, wk, wv, wp, bp)
    # TODO(synk): attn_drop / proj_drop are identity at p=0.0 (eval); stateful
    # dropout (pltpu.prng_*) is not implemented.


def attention_reference(x, w_qkv, w_proj, b_proj, num_heads):
    """Pure-JAX mirror of the PyTorch forward."""
    B, N, C = x.shape
    hd = C // num_heads
    scale = math.sqrt(hd)
    qkv = (x @ w_qkv).reshape(B, N, 3, num_heads, hd).transpose(2, 0, 3, 1, 4)
    q, k, v = qkv[0], qkv[1], qkv[2]                       # (B, H, N, hd)
    attn = jnp.einsum("bhnd,bhmd->bhnm", q, k) * scale
    attn = jax.nn.softmax(attn, axis=-1)
    ctx = jnp.einsum("bhnm,bhmd->bhnd", attn, v)
    ctx = ctx.transpose(0, 2, 1, 3).reshape(B, N, C)
    return ctx @ w_proj + b_proj


if __name__ == "__main__":
    # Small shapes consistent with the module's forward: batch=2, seq=8,
    # hidden=32, heads=8 (head_dim=4).
    B, N, C, H = 2, 8, 32, 8

    key = jax.random.PRNGKey(0)
    kx, kqkv, kp, kb = jax.random.split(key, 4)

    x = jax.random.normal(kx, (B, N, C), dtype=jnp.float32)
    w_qkv = jax.random.normal(kqkv, (C, 3 * C), dtype=jnp.float32) * 0.1
    w_proj = jax.random.normal(kp, (C, C), dtype=jnp.float32) * 0.1
    b_proj = jax.random.normal(kb, (C,), dtype=jnp.float32) * 0.1

    out = attention_forward(x, w_qkv, w_proj, b_proj, H)
    out = jax.block_until_ready(out)

    ref = attention_reference(x, w_qkv, w_proj, b_proj, H)
    assert out.shape == (B, N, C)
    assert jnp.allclose(out, ref, atol=1e-4, rtol=1e-4), float(
        jnp.max(jnp.abs(out - ref)))

    print("KERNEL_OK")
</pallas_src>

<mosaic_0001>
module attributes {stable_mosaic.version = 11 : i64} {
  func.func @_attention_kernel(%arg0: i32, %arg1: memref<1x8x32xf32, #tpu.memory_space<vmem>>, %arg2: memref<8x32x4xf32, #tpu.memory_space<vmem>>, %arg3: memref<8x32x4xf32, #tpu.memory_space<vmem>>, %arg4: memref<8x32x4xf32, #tpu.memory_space<vmem>>, %arg5: memref<8x4x32xf32, #tpu.memory_space<vmem>>, %arg6: memref<1x32xf32, #tpu.memory_space<vmem>>, %arg7: memref<1x8x32xf32, #tpu.memory_space<vmem>>) attributes {dimension_semantics = [#tpu.dimension_semantics<parallel>], iteration_bounds = array<i64: 2>, scalar_prefetch = 0 : i64, scratch_operands = 0 : i64, tpu.core_type = #tpu.core_type<tc>, window_params = [{transform_indices = @transform_0, window_bounds = array<i64: 1, 8, 32>}, {pipeline_mode = #tpu.pipeline_mode<synchronous>, transform_indices = @transform_1, window_bounds = array<i64: 8, 32, 4>}, {pipeline_mode = #tpu.pipeline_mode<synchronous>, transform_indices = @transform_2, window_bounds = array<i64: 8, 32, 4>}, {pipeline_mode = #tpu.pipeline_mode<synchronous>, transform_indices = @transform_3, window_bounds = array<i64: 8, 32, 4>}, {pipeline_mode = #tpu.pipeline_mode<synchronous>, transform_indices = @transform_4, window_bounds = array<i64: 8, 4, 32>}, {pipeline_mode = #tpu.pipeline_mode<synchronous>, transform_indices = @transform_5, window_bounds = array<i64: 1, 32>}, {transform_indices = @transform_6, window_bounds = array<i64: 1, 8, 32>}]} {
    %c0 = arith.constant 0 : index
    %c0_0 = arith.constant 0 : index
    %c0_1 = arith.constant 0 : index
    %0 = vector.load %arg1[%c0, %c0_0, %c0_1] : memref<1x8x32xf32, #tpu.memory_space<vmem>>, vector<1x8x32xf32>
    %1 = vector.shape_cast %0 : vector<1x8x32xf32> to vector<8x32xf32>
    %cst = arith.constant 0.000000e+00 : f32
    %2 = vector.broadcast %cst : f32 to vector<8x32xf32>
    %c0_2 = arith.constant 0 : index
    %c0_3 = arith.constant 0 : index
    %c0_4 = arith.constant 0 : index
    %3 = vector.load %arg2[%c0_2, %c0_3, %c0_4] : memref<8x32x4xf32, #tpu.memory_space<vmem>>, vector<1x32x4xf32>
    %4 = vector.shape_cast %3 : vector<1x32x4xf32> to vector<32x4xf32>
    %cst_5 = arith.constant dense<0.000000e+00> : vector<8x4xf32>
    %5 = tpu.matmul %1, %4, %cst_5 {dimension_numbers = #tpu.dot_dimension_numbers<[1], [0], [0], [1], [0, 0, 1, 1], [], []>} : vector<8x32xf32>, vector<32x4xf32>, vector<8x4xf32> -> vector<8x4xf32>
    %c0_6 = arith.constant 0 : index
    %c0_7 = arith.constant 0 : index
    %c0_8 = arith.constant 0 : index
    %6 = vector.load %arg3[%c0_6, %c0_7, %c0_8] : memref<8x32x4xf32, #tpu.memory_space<vmem>>, vector<1x32x4xf32>
    %7 = vector.shape_cast %6 : vector<1x32x4xf32> to vector<32x4xf32>
    %cst_9 = arith.constant dense<0.000000e+00> : vector<8x4xf32>
    %8 = tpu.matmul %1, %7, %cst_9 {dimension_numbers = #tpu.dot_dimension_numbers<[1], [0], [0], [1], [0, 0, 1, 1], [], []>} : vector<8x32xf32>, vector<32x4xf32>, vector<8x4xf32> -> vector<8x4xf32>
    %c0_10 = arith.constant 0 : index
    %c0_11 = arith.constant 0 : index
    %c0_12 = arith.constant 0 : index
    %9 = vector.load %arg4[%c0_10, %c0_11, %c0_12] : memref<8x32x4xf32, #tpu.memory_space<vmem>>, vector<1x32x4xf32>
    %10 = vector.shape_cast %9 : vector<1x32x4xf32> to vector<32x4xf32>
    %cst_13 = arith.constant dense<0.000000e+00> : vector<8x4xf32>
    %11 = tpu.matmul %1, %10, %cst_13 {dimension_numbers = #tpu.dot_dimension_numbers<[1], [0], [0], [1], [0, 0, 1, 1], [], []>} : vector<8x32xf32>, vector<32x4xf32>, vector<8x4xf32> -> vector<8x4xf32>
    %cst_14 = arith.constant dense<0.000000e+00> : vector<8x8xf32>
    %12 = tpu.matmul %5, %8, %cst_14 {dimension_numbers = #tpu.dot_dimension_numbers<[1], [1], [0], [0], [0, 0, 1, 0], [], []>} : vector<8x4xf32>, vector<8x4xf32>, vector<8x8xf32> -> vector<8x8xf32>
    %cst_15 = arith.constant dense<0xFF800000> : vector<8xf32>
    %13 = vector.multi_reduction <maximumf>, %12, %cst_15 [1] : vector<8x8xf32> to vector<8xf32>
    %14 = vector.shape_cast %13 : vector<8xf32> to vector<8x1xf32>
    %15 = vector.broadcast %14 : vector<8x1xf32> to vector<8x8xf32>
    %16 = arith.subf %12, %15 : vector<8x8xf32>
    %17 = math.exp %16 : vector<8x8xf32>
    %cst_16 = arith.constant dense<0.000000e+00> : vector<8xf32>
    %18 = vector.multi_reduction <add>, %17, %cst_16 [1] : vector<8x8xf32> to vector<8xf32>
    %19 = vector.shape_cast %18 : vector<8xf32> to vector<8x1xf32>
    %20 = vector.broadcast %19 : vector<8x1xf32> to vector<8x8xf32>
    %21 = arith.divf %17, %20 : vector<8x8xf32>
    %cst_17 = arith.constant dense<0.000000e+00> : vector<8x4xf32>
    %22 = tpu.matmul %21, %11, %cst_17 {dimension_numbers = #tpu.dot_dimension_numbers<[1], [0], [0], [1], [0, 0, 1, 1], [], []>} : vector<8x8xf32>, vector<8x4xf32>, vector<8x4xf32> -> vector<8x4xf32>
    %c0_18 = arith.constant 0 : index
    %c0_19 = arith.constant 0 : index
    %c0_20 = arith.constant 0 : index
    %23 = vector.load %arg5[%c0_18, %c0_19, %c0_20] : memref<8x4x32xf32, #tpu.memory_space<vmem>>, vector<1x4x32xf32>
    %24 = vector.shape_cast %23 : vector<1x4x32xf32> to vector<4x32xf32>
    %cst_21 = arith.constant dense<0.000000e+00> : vector<8x32xf32>
    %25 = tpu.matmul %22, %24, %cst_21 {dimension_numbers = #tpu.dot_dimension_numbers<[1], [0], [0], [1], [0, 0, 1, 1], [], []>} : vector<8x4xf32>, vector<4x32xf32>, vector<8x32xf32> -> vector<8x32xf32>
    %26 = arith.addf %2, %25 : vector<8x32xf32>
    %c1 = arith.constant 1 : index
    %c0_22 = arith.constant 0 : index
    %c0_23 = arith.constant 0 : index
    %27 = vector.load %arg2[%c1, %c0_22, %c0_23] : memref<8x32x4xf32, #tpu.memory_space<vmem>>, vector<1x32x4xf32>
    %28 = vector.shape_cast %27 : vector<1x32x4xf32> to vector<32x4xf32>
    %cst_24 = arith.constant dense<0.000000e+00> : vector<8x4xf32>
    %29 = tpu.matmul %1, %28, %cst_24 {dimension_numbers = #tpu.dot_dimension_numbers<[1], [0], [0], [1], [0, 0, 1, 1], [], []>} : vector<8x32xf32>, vector<32x4xf32>, vector<8x4xf32> -> vector<8x4xf32>
    %c1_25 = arith.constant 1 : index
    %c0_26 = arith.constant 0 : index
    %c0_27 = arith.constant 0 : index
    %30 = vector.load %arg3[%c1_25, %c0_26, %c0_27] : memref<8x32x4xf32, #tpu.memory_space<vmem>>, vector<1x32x4xf32>
    %31 = vector.shape_cast %30 : vector<1x32x4xf32> to vector<32x4xf32>
    %cst_28 = arith.constant dense<0.000000e+00> : vector<8x4xf32>
    %32 = tpu.matmul %1, %31, %cst_28 {dimension_numbers = #tpu.dot_dimension_numbers<[1], [0], [0], [1], [0, 0, 1, 1], [], []>} : vector<8x32xf32>, vector<32x4xf32>, vector<8x4xf32> -> vector<8x4xf32>
    %c1_29 = arith.constant 1 : index
    %c0_30 = arith.constant 0 : index
    %c0_31 = arith.constant 0 : index
    %33 = vector.load %arg4[%c1_29, %c0_30, %c0_31] : memref<8x32x4xf32, #tpu.memory_space<vmem>>, vector<1x32x4xf32>
    %34 = vector.shape_cast %33 : vector<1x32x4xf32> to vector<32x4xf32>
    %cst_32 = arith.constant dense<0.000000e+00> : vector<8x4xf32>
    %35 = tpu.matmul %1, %34, %cst_32 {dimension_numbers = #tpu.dot_dimension_numbers<[1], [0], [0], [1], [0, 0, 1, 1], [], []>} : vector<8x32xf32>, vector<32x4xf32>, vector<8x4xf32> -> vector<8x4xf32>
    %cst_33 = arith.constant dense<0.000000e+00> : vector<8x8xf32>
    %36 = tpu.matmul %29, %32, %cst_33 {dimension_numbers = #tpu.dot_dimension_numbers<[1], [1], [0], [0], [0, 0, 1, 0], [], []>} : vector<8x4xf32>, vector<8x4xf32>, vector<8x8xf32> -> vector<8x8xf32>
    %cst_34 = arith.constant dense<0xFF800000> : vector<8xf32>
    %37 = vector.multi_reduction <maximumf>, %36, %cst_34 [1] : vector<8x8xf32> to vector<8xf32>
    %38 = vector.shape_cast %37 : vector<8xf32> to vector<8x1xf32>
    %39 = vector.broadcast %38 : vector<8x1xf32> to vector<8x8xf32>
    %40 = arith.subf %36, %39 : vector<8x8xf32>
    %41 = math.exp %40 : vector<8x8xf32>
    %cst_35 = arith.constant dense<0.000000e+00> : vector<8xf32>
    %42 = vector.multi_reduction <add>, %41, %cst_35 [1] : vector<8x8xf32> to vector<8xf32>
    %43 = vector.shape_cast %42 : vector<8xf32> to vector<8x1xf32>
    %44 = vector.broadcast %43 : vector<8x1xf32> to vector<8x8xf32>
    %45 = arith.divf %41, %44 : vector<8x8xf32>
    %cst_36 = arith.constant dense<0.000000e+00> : vector<8x4xf32>
    %46 = tpu.matmul %45, %35, %cst_36 {dimension_numbers = #tpu.dot_dimension_numbers<[1], [0], [0], [1], [0, 0, 1, 1], [], []>} : vector<8x8xf32>, vector<8x4xf32>, vector<8x4xf32> -> vector<8x4xf32>
    %c1_37 = arith.constant 1 : index
    %c0_38 = arith.constant 0 : index
    %c0_39 = arith.constant 0 : index
    %47 = vector.load %arg5[%c1_37, %c0_38, %c0_39] : memref<8x4x32xf32, #tpu.memory_space<vmem>>, vector<1x4x32xf32>
    %48 = vector.shape_cast %47 : vector<1x4x32xf32> to vector<4x32xf32>
    %cst_40 = arith.constant dense<0.000000e+00> : vector<8x32xf32>
    %49 = tpu.matmul %46, %48, %cst_40 {dimension_numbers = #tpu.dot_dimension_numbers<[1], [0], [0], [1], [0, 0, 1, 1], [], []>} : vector<8x4xf32>, vector<4x32xf32>, vector<8x32xf32> -> vector<8x32xf32>
    %50 = arith.addf %26, %49 : vector<8x32xf32>
    %c2 = arith.constant 2 : index
    %c0_41 = arith.constant 0 : index
    %c0_42 = arith.constant 0 : index
    %51 = vector.load %arg2[%c2, %c0_41, %c0_42] : memref<8x32x4xf32, #tpu.memory_space<vmem>>, vector<1x32x4xf32>
    %52 = vector.shape_cast %51 : vector<1x32x4xf32> to vector<32x4xf32>
    %cst_43 = arith.constant dense<0.000000e+00> : vector<8x4xf32>
    %53 = tpu.matmul %1, %52, %cst_43 {dimension_numbers = #tpu.dot_dimension_numbers<[1], [0], [0], [1], [0, 0, 1, 1], [], []>} : vector<8x32xf32>, vector<32x4xf32>, vector<8x4xf32> -> vector<8x4xf32>
    %c2_44 = arith.constant 2 : index
    %c0_45 = arith.constant 0 : index
    %c0_46 = arith.constant 0 : index
    %54 = vector.load %arg3[%c2_44, %c0_45, %c0_46] : memref<8x32x4xf32, #tpu.memory_space<vmem>>, vector<1x32x4xf32>
    %55 = vector.shape_cast %54 : vector<1x32x4xf32> to vector<32x4xf32>
    %cst_47 = arith.constant dense<0.000000e+00> : vector<8x4xf32>
    %56 = tpu.matmul %1, %55, %cst_47 {dimension_numbers = #tpu.dot_dimension_numbers<[1], [0], [0], [1], [0, 0, 1, 1], [], []>} : vector<8x32xf32>, vector<32x4xf32>, vector<8x4xf32> -> vector<8x4xf32>
    %c2_48 = arith.constant 2 : index
    %c0_49 = arith.constant 0 : index
    %c0_50 = arith.constant 0 : index
    %57 = vector.load %arg4[%c2_48, %c0_49, %c0_50] : memref<8x32x4xf32, #tpu.memory_space<vmem>>, vector<1x32x4xf32>
    %58 = vector.shape_cast %57 : vector<1x32x4xf32> to vector<32x4xf32>
    %cst_51 = arith.constant dense<0.000000e+00> : vector<8x4xf32>
    %59 = tpu.matmul %1, %58, %cst_51 {dimension_numbers = #tpu.dot_dimension_numbers<[1], [0], [0], [1], [0, 0, 1, 1], [], []>} : vector<8x32xf32>, vector<32x4xf32>, vector<8x4xf32> -> vector<8x4xf32>
    %cst_52 = arith.constant dense<0.000000e+00> : vector<8x8xf32>
    %60 = tpu.matmul %53, %56, %cst_52 {dimension_numbers = #tpu.dot_dimension_numbers<[1], [1], [0], [0], [0, 0, 1, 0], [], []>} : vector<8x4xf32>, vector<8x4xf32>, vector<8x8xf32> -> vector<8x8xf32>
    %cst_53 = arith.constant dense<0xFF800000> : vector<8xf32>
    %61 = vector.multi_reduction <maximumf>, %60, %cst_53 [1] : vector<8x8xf32> to vector<8xf32>
    %62 = vector.shape_cast %61 : vector<8xf32> to vector<8x1xf32>
    %63 = vector.broadcast %62 : vector<8x1xf32> to vector<8x8xf32>
    %64 = arith.subf %60, %63 : vector<8x8xf32>
    %65 = math.exp %64 : vector<8x8xf32>
    %cst_54 = arith.constant dense<0.000000e+00> : vector<8xf32>
    %66 = vector.multi_reduction <add>, %65, %cst_54 [1] : vector<8x8xf32> to vector<8xf32>
    %67 = vector.shape_cast %66 : vector<8xf32> to vector<8x1xf32>
    %68 = vector.broadcast %67 : vector<8x1xf32> to vector<8x8xf32>
    %69 = arith.divf %65, %68 : vector<8x8xf32>
    %cst_55 = arith.constant dense<0.000000e+00> : vector<8x4xf32>
    %70 = tpu.matmul %69, %59, %cst_55 {dimension_numbers = #tpu.dot_dimension_numbers<[1], [0], [0], [1], [0, 0, 1, 1], [], []>} : vector<8x8xf32>, vector<8x4xf32>, vector<8x4xf32> -> vector<8x4xf32>
    %c2_56 = arith.constant 2 : index
    %c0_57 = arith.constant 0 : index
    %c0_58 = arith.constant 0 : index
    %71 = vector.load %arg5[%c2_56, %c0_57, %c0_58] : memref<8x4x32xf32, #tpu.memory_space<vmem>>, vector<1x4x32xf32>
    %72 = vector.shape_cast %71 : vector<1x4x32xf32> to vector<4x32xf32>
    %cst_59 = arith.constant dense<0.000000e+00> : vector<8x32xf32>
    %73 = tpu.matmul %70, %72, %cst_59 {dimension_numbers = #tpu.dot_dimension_numbers<[1], [0], [0], [1], [0, 0, 1, 1], [], []>} : vector<8x4xf32>, vector<4x32xf32>, vector<8x32xf32> -> vector<8x32xf32>
    %74 = arith.addf %50, %73 : vector<8x32xf32>
    %c3 = arith.constant 3 : index
    %c0_60 = arith.constant 0 : index
    %c0_61 = arith.constant 0 : index
    %75 = vector.load %arg2[%c3, %c0_60, %c0_61] : memref<8x32x4xf32, #tpu.memory_space<vmem>>, vector<1x32x4xf32>
    %76 = vector.shape_cast %75 : vector<1x32x4xf32> to vector<32x4xf32>
    %cst_62 = arith.constant dense<0.000000e+00> : vector<8x4xf32>
    %77 = tpu.matmul %1, %76, %cst_62 {dimension_numbers = #tpu.dot_dimension_numbers<[1], [0], [0], [1], [0, 0, 1, 1], [], []>} : vector<8x32xf32>, vector<32x4xf32>, vector<8x4xf32> -> vector<8x4xf32>
    %c3_63 = arith.constant 3 : index
    %c0_64 = arith.constant 0 : index
    %c0_65 = arith.constant 0 : index
    %78 = vector.load %arg3[%c3_63, %c0_64, %c0_65] : memref<8x32x4xf32, #tpu.memory_space<vmem>>, vector<1x32x4xf32>
    %79 = vector.shape_cast %78 : vector<1x32x4xf32> to vector<32x4xf32>
    %cst_66 = arith.constant dense<0.000000e+00> : vector<8x4xf32>
    %80 = tpu.matmul %1, %79, %cst_66 {dimension_numbers = #tpu.dot_dimension_numbers<[1], [0], [0], [1], [0, 0, 1, 1], [], []>} : vector<8x32xf32>, vector<32x4xf32>, vector<8x4xf32> -> vector<8x4xf32>
    %c3_67 = arith.constant 3 : index
    %c0_68 = arith.constant 0 : index
    %c0_69 = arith.constant 0 : index
    %81 = vector.load %arg4[%c3_67, %c0_68, %c0_69] : memref<8x32x4xf32, #tpu.memory_space<vmem>>, vector<1x32x4xf32>
    %82 = vector.shape_cast %81 : vector<1x32x4xf32> to vector<32x4xf32>
    %cst_70 = arith.constant dense<0.000000e+00> : vector<8x4xf32>
    %83 = tpu.matmul %1, %82, %cst_70 {dimension_numbers = #tpu.dot_dimension_numbers<[1], [0], [0], [1], [0, 0, 1, 1], [], []>} : vector<8x32xf32>, vector<32x4xf32>, vector<8x4xf32> -> vector<8x4xf32>
    %cst_71 = arith.constant dense<0.000000e+00> : vector<8x8xf32>
    %84 = tpu.matmul %77, %80, %cst_71 {dimension_numbers = #tpu.dot_dimension_numbers<[1], [1], [0], [0], [0, 0, 1, 0], [], []>} : vector<8x4xf32>, vector<8x4xf32>, vector<8x8xf32> -> vector<8x8xf32>
    %cst_72 = arith.constant dense<0xFF800000> : vector<8xf32>
    %85 = vector.multi_reduction <maximumf>, %84, %cst_72 [1] : vector<8x8xf32> to vector<8xf32>
    %86 = vector.shape_cast %85 : vector<8xf32> to vector<8x1xf32>
    %87 = vector.broadcast %86 : vector<8x1xf32> to vector<8x8xf32>
    %88 = arith.subf %84, %87 : vector<8x8xf32>
    %89 = math.exp %88 : vector<8x8xf32>
    %cst_73 = arith.constant dense<0.000000e+00> : vector<8xf32>
    %90 = vector.multi_reduction <add>, %89, %cst_73 [1] : vector<8x8xf32> to vector<8xf32>
    %91 = vector.shape_cast %90 : vector<8xf32> to vector<8x1xf32>
    %92 = vector.broadcast %91 : vector<8x1xf32> to vector<8x8xf32>
    %93 = arith.divf %89, %92 : vector<8x8xf32>
    %cst_74 = arith.constant dense<0.000000e+00> : vector<8x4xf32>
    %94 = tpu.matmul %93, %83, %cst_74 {dimension_numbers = #tpu.dot_dimension_numbers<[1], [0], [0], [1], [0, 0, 1, 1], [], []>} : vector<8x8xf32>, vector<8x4xf32>, vector<8x4xf32> -> vector<8x4xf32>
    %c3_75 = arith.constant 3 : index
    %c0_76 = arith.constant 0 : index
    %c0_77 = arith.constant 0 : index
    %95 = vector.load %arg5[%c3_75, %c0_76, %c0_77] : memref<8x4x32xf32, #tpu.memory_space<vmem>>, vector<1x4x32xf32>
    %96 = vector.shape_cast %95 : vector<1x4x32xf32> to vector<4x32xf32>
    %cst_78 = arith.constant dense<0.000000e+00> : vector<8x32xf32>
    %97 = tpu.matmul %94, %96, %cst_78 {dimension_numbers = #tpu.dot_dimension_numbers<[1], [0], [0], [1], [0, 0, 1, 1], [], []>} : vector<8x4xf32>, vector<4x32xf32>, vector<8x32xf32> -> vector<8x32xf32>
    %98 = arith.addf %74, %97 : vector<8x32xf32>
    %c4 = arith.constant 4 : index
    %c0_79 = arith.constant 0 : index
    %c0_80 = arith.constant 0 : index
    %99 = vector.load %arg2[%c4, %c0_79, %c0_80] : memref<8x32x4xf32, #tpu.memory_space<vmem>>, vector<1x32x4xf32>
    %100 = vector.shape_cast %99 : vector<1x32x4xf32> to vector<32x4xf32>
    %cst_81 = arith.constant dense<0.000000e+00> : vector<8x4xf32>
    %101 = tpu.matmul %1, %100, %cst_81 {dimension_numbers = #tpu.dot_dimension_numbers<[1], [0], [0], [1], [0, 0, 1, 1], [], []>} : vector<8x32xf32>, vector<32x4xf32>, vector<8x4xf32> -> vector<8x4xf32>
    %c4_82 = arith.constant 4 : index
    %c0_83 = arith.constant 0 : index
    %c0_84 = arith.constant 0 : index
    %102 = vector.load %arg3[%c4_82, %c0_83, %c0_84] : memref<8x32x4xf32, #tpu.memory_space<vmem>>, vector<1x32x4xf32>
    %103 = vector.shape_cast %102 : vector<1x32x4xf32> to vector<32x4xf32>
    %cst_85 = arith.constant dense<0.000000e+00> : vector<8x4xf32>
    %104 = tpu.matmul %1, %103, %cst_85 {dimension_numbers = #tpu.dot_dimension_numbers<[1], [0], [0], [1], [0, 0, 1, 1], [], []>} : vector<8x32xf32>, vector<32x4xf32>, vector<8x4xf32> -> vector<8x4xf32>
    %c4_86 = arith.constant 4 : index
    %c0_87 = arith.constant 0 : index
    %c0_88 = arith.constant 0 : index
    %105 = vector.load %arg4[%c4_86, %c0_87, %c0_88] : memref<8x32x4xf32, #tpu.memory_space<vmem>>, vector<1x32x4xf32>
    %106 = vector.shape_cast %105 : vector<1x32x4xf32> to vector<32x4xf32>
    %cst_89 = arith.constant dense<0.000000e+00> : vector<8x4xf32>
    %107 = tpu.matmul %1, %106, %cst_89 {dimension_numbers = #tpu.dot_dimension_numbers<[1], [0], [0], [1], [0, 0, 1, 1], [], []>} : vector<8x32xf32>, vector<32x4xf32>, vector<8x4xf32> -> vector<8x4xf32>
    %cst_90 = arith.constant dense<0.000000e+00> : vector<8x8xf32>
    %108 = tpu.matmul %101, %104, %cst_90 {dimension_numbers = #tpu.dot_dimension_numbers<[1], [1], [0], [0], [0, 0, 1, 0], [], []>} : vector<8x4xf32>, vector<8x4xf32>, vector<8x8xf32> -> vector<8x8xf32>
    %cst_91 = arith.constant dense<0xFF800000> : vector<8xf32>
    %109 = vector.multi_reduction <maximumf>, %108, %cst_91 [1] : vector<8x8xf32> to vector<8xf32>
    %110 = vector.shape_cast %109 : vector<8xf32> to vector<8x1xf32>
    %111 = vector.broadcast %110 : vector<8x1xf32> to vector<8x8xf32>
    %112 = arith.subf %108, %111 : vector<8x8xf32>
    %113 = math.exp %112 : vector<8x8xf32>
    %cst_92 = arith.constant dense<0.000000e+00> : vector<8xf32>
    %114 = vector.multi_reduction <add>, %113, %cst_92 [1] : vector<8x8xf32> to vector<8xf32>
    %115 = vector.shape_cast %114 : vector<8xf32> to vector<8x1xf32>
    %116 = vector.broadcast %115 : vector<8x1xf32> to vector<8x8xf32>
    %117 = arith.divf %113, %116 : vector<8x8xf32>
    %cst_93 = arith.constant dense<0.000000e+00> : vector<8x4xf32>
    %118 = tpu.matmul %117, %107, %cst_93 {dimension_numbers = #tpu.dot_dimension_numbers<[1], [0], [0], [1], [0, 0, 1, 1], [], []>} : vector<8x8xf32>, vector<8x4xf32>, vector<8x4xf32> -> vector<8x4xf32>
    %c4_94 = arith.constant 4 : index
    %c0_95 = arith.constant 0 : index
    %c0_96 = arith.constant 0 : index
    %119 = vector.load %arg5[%c4_94, %c0_95, %c0_96] : memref<8x4x32xf32, #tpu.memory_space<vmem>>, vector<1x4x32xf32>
    %120 = vector.shape_cast %119 : vector<1x4x32xf32> to vector<4x32xf32>
    %cst_97 = arith.constant dense<0.000000e+00> : vector<8x32xf32>
    %121 = tpu.matmul %118, %120, %cst_97 {dimension_numbers = #tpu.dot_dimension_numbers<[1], [0], [0], [1], [0, 0, 1, 1], [], []>} : vector<8x4xf32>, vector<4x32xf32>, vector<8x32xf32> -> vector<8x32xf32>
    %122 = arith.addf %98, %121 : vector<8x32xf32>
    %c5 = arith.constant 5 : index
    %c0_98 = arith.constant 0 : index
    %c0_99 = arith.constant 0 : index
    %123 = vector.load %arg2[%c5, %c0_98, %c0_99] : memref<8x32x4xf32, #tpu.memory_space<vmem>>, vector<1x32x4xf32>
    %124 = vector.shape_cast %123 : vector<1x32x4xf32> to vector<32x4xf32>
    %cst_100 = arith.constant dense<0.000000e+00> : vector<8x4xf32>
    %125 = tpu.matmul %1, %124, %cst_100 {dimension_numbers = #tpu.dot_dimension_numbers<[1], [0], [0], [1], [0, 0, 1, 1], [], []>} : vector<8x32xf32>, vector<32x4xf32>, vector<8x4xf32> -> vector<8x4xf32>
    %c5_101 = arith.constant 5 : index
    %c0_102 = arith.constant 0 : index
    %c0_103 = arith.constant 0 : index
    %126 = vector.load %arg3[%c5_101, %c0_102, %c0_103] : memref<8x32x4xf32, #tpu.memory_space<vmem>>, vector<1x32x4xf32>
    %127 = vector.shape_cast %126 : vector<1x32x4xf32> to vector<32x4xf32>
    %cst_104 = arith.constant dense<0.000000e+00> : vector<8x4xf32>
    %128 = tpu.matmul %1, %127, %cst_104 {dimension_numbers = #tpu.dot_dimension_numbers<[1], [0], [0], [1], [0, 0, 1, 1], [], []>} : vector<8x32xf32>, vector<32x4xf32>, vector<8x4xf32> -> vector<8x4xf32>
    %c5_105 = arith.constant 5 : index
    %c0_106 = arith.constant 0 : index
    %c0_107 = arith.constant 0 : index
    %129 = vector.load %arg4[%c5_105, %c0_106, %c0_107] : memref<8x32x4xf32, #tpu.memory_space<vmem>>, vector<1x32x4xf32>
    %130 = vector.shape_cast %129 : vector<1x32x4xf32> to vector<32x4xf32>
    %cst_108 = arith.constant dense<0.000000e+00> : vector<8x4xf32>
    %131 = tpu.matmul %1, %130, %cst_108 {dimension_numbers = #tpu.dot_dimension_numbers<[1], [0], [0], [1], [0, 0, 1, 1], [], []>} : vector<8x32xf32>, vector<32x4xf32>, vector<8x4xf32> -> vector<8x4xf32>
    %cst_109 = arith.constant dense<0.000000e+00> : vector<8x8xf32>
    %132 = tpu.matmul %125, %128, %cst_109 {dimension_numbers = #tpu.dot_dimension_numbers<[1], [1], [0], [0], [0, 0, 1, 0], [], []>} : vector<8x4xf32>, vector<8x4xf32>, vector<8x8xf32> -> vector<8x8xf32>
    %cst_110 = arith.constant dense<0xFF800000> : vector<8xf32>
    %133 = vector.multi_reduction <maximumf>, %132, %cst_110 [1] : vector<8x8xf32> to vector<8xf32>
    %134 = vector.shape_cast %133 : vector<8xf32> to vector<8x1xf32>
    %135 = vector.broadcast %134 : vector<8x1xf32> to vector<8x8xf32>
    %136 = arith.subf %132, %135 : vector<8x8xf32>
    %137 = math.exp %136 : vector<8x8xf32>
    %cst_111 = arith.constant dense<0.000000e+00> : vector<8xf32>
    %138 = vector.multi_reduction <add>, %137, %cst_111 [1] : vector<8x8xf32> to vector<8xf32>
    %139 = vector.shape_cast %138 : vector<8xf32> to vector<8x1xf32>
    %140 = vector.broadcast %139 : vector<8x1xf32> to vector<8x8xf32>
    %141 = arith.divf %137, %140 : vector<8x8xf32>
    %cst_112 = arith.constant dense<0.000000e+00> : vector<8x4xf32>
    %142 = tpu.matmul %141, %131, %cst_112 {dimension_numbers = #tpu.dot_dimension_numbers<[1], [0], [0], [1], [0, 0, 1, 1], [], []>} : vector<8x8xf32>, vector<8x4xf32>, vector<8x4xf32> -> vector<8x4xf32>
    %c5_113 = arith.constant 5 : index
    %c0_114 = arith.constant 0 : index
    %c0_115 = arith.constant 0 : index
    %143 = vector.load %arg5[%c5_113, %c0_114, %c0_115] : memref<8x4x32xf32, #tpu.memory_space<vmem>>, vector<1x4x32xf32>
    %144 = vector.shape_cast %143 : vector<1x4x32xf32> to vector<4x32xf32>
    %cst_116 = arith.constant dense<0.000000e+00> : vector<8x32xf32>
    %145 = tpu.matmul %142, %144, %cst_116 {dimension_numbers = #tpu.dot_dimension_numbers<[1], [0], [0], [1], [0, 0, 1, 1], [], []>} : vector<8x4xf32>, vector<4x32xf32>, vector<8x32xf32> -> vector<8x32xf32>
    %146 = arith.addf %122, %145 : vector<8x32xf32>
    %c6 = arith.constant 6 : index
    %c0_117 = arith.constant 0 : index
    %c0_118 = arith.constant 0 : index
    %147 = vector.load %arg2[%c6, %c0_117, %c0_118] : memref<8x32x4xf32, #tpu.memory_space<vmem>>, vector<1x32x4xf32>
    %148 = vector.shape_cast %147 : vector<1x32x4xf32> to vector<32x4xf32>
    %cst_119 = arith.constant dense<0.000000e+00> : vector<8x4xf32>
    %149 = tpu.matmul %1, %148, %cst_119 {dimension_numbers = #tpu.dot_dimension_numbers<[1], [0], [0], [1], [0, 0, 1, 1], [], []>} : vector<8x32xf32>, vector<32x4xf32>, vector<8x4xf32> -> vector<8x4xf32>
    %c6_120 = arith.constant 6 : index
    %c0_121 = arith.constant 0 : index
    %c0_122 = arith.constant 0 : index
    %150 = vector.load %arg3[%c6_120, %c0_121, %c0_122] : memref<8x32x4xf32, #tpu.memory_space<vmem>>, vector<1x32x4xf32>
    %151 = vector.shape_cast %150 : vector<1x32x4xf32> to vector<32x4xf32>
    %cst_123 = arith.constant dense<0.000000e+00> : vector<8x4xf32>
    %152 = tpu.matmul %1, %151, %cst_123 {dimension_numbers = #tpu.dot_dimension_numbers<[1], [0], [0], [1], [0, 0, 1, 1], [], []>} : vector<8x32xf32>, vector<32x4xf32>, vector<8x4xf32> -> vector<8x4xf32>
    %c6_124 = arith.constant 6 : index
    %c0_125 = arith.constant 0 : index
    %c0_126 = arith.constant 0 : index
    %153 = vector.load %arg4[%c6_124, %c0_125, %c0_126] : memref<8x32x4xf32, #tpu.memory_space<vmem>>, vector<1x32x4xf32>
    %154 = vector.shape_cast %153 : vector<1x32x4xf32> to vector<32x4xf32>
    %cst_127 = arith.constant dense<0.000000e+00> : vector<8x4xf32>
    %155 = tpu.matmul %1, %154, %cst_127 {dimension_numbers = #tpu.dot_dimension_numbers<[1], [0], [0], [1], [0, 0, 1, 1], [], []>} : vector<8x32xf32>, vector<32x4xf32>, vector<8x4xf32> -> vector<8x4xf32>
    %cst_128 = arith.constant dense<0.000000e+00> : vector<8x8xf32>
    %156 = tpu.matmul %149, %152, %cst_128 {dimension_numbers = #tpu.dot_dimension_numbers<[1], [1], [0], [0], [0, 0, 1, 0], [], []>} : vector<8x4xf32>, vector<8x4xf32>, vector<8x8xf32> -> vector<8x8xf32>
    %cst_129 = arith.constant dense<0xFF800000> : vector<8xf32>
    %157 = vector.multi_reduction <maximumf>, %156, %cst_129 [1] : vector<8x8xf32> to vector<8xf32>
    %158 = vector.shape_cast %157 : vector<8xf32> to vector<8x1xf32>
    %159 = vector.broadcast %158 : vector<8x1xf32> to vector<8x8xf32>
    %160 = arith.subf %156, %159 : vector<8x8xf32>
    %161 = math.exp %160 : vector<8x8xf32>
    %cst_130 = arith.constant dense<0.000000e+00> : vector<8xf32>
    %162 = vector.multi_reduction <add>, %161, %cst_130 [1] : vector<8x8xf32> to vector<8xf32>
    %163 = vector.shape_cast %162 : vector<8xf32> to vector<8x1xf32>
    %164 = vector.broadcast %163 : vector<8x1xf32> to vector<8x8xf32>
    %165 = arith.divf %161, %164 : vector<8x8xf32>
    %cst_131 = arith.constant dense<0.000000e+00> : vector<8x4xf32>
    %166 = tpu.matmul %165, %155, %cst_131 {dimension_numbers = #tpu.dot_dimension_numbers<[1], [0], [0], [1], [0, 0, 1, 1], [], []>} : vector<8x8xf32>, vector<8x4xf32>, vector<8x4xf32> -> vector<8x4xf32>
    %c6_132 = arith.constant 6 : index
    %c0_133 = arith.constant 0 : index
    %c0_134 = arith.constant 0 : index
    %167 = vector.load %arg5[%c6_132, %c0_133, %c0_134] : memref<8x4x32xf32, #tpu.memory_space<vmem>>, vector<1x4x32xf32>
    %168 = vector.shape_cast %167 : vector<1x4x32xf32> to vector<4x32xf32>
    %cst_135 = arith.constant dense<0.000000e+00> : vector<8x32xf32>
    %169 = tpu.matmul %166, %168, %cst_135 {dimension_numbers = #tpu.dot_dimension_numbers<[1], [0], [0], [1], [0, 0, 1, 1], [], []>} : vector<8x4xf32>, vector<4x32xf32>, vector<8x32xf32> -> vector<8x32xf32>
    %170 = arith.addf %146, %169 : vector<8x32xf32>
    %c7 = arith.constant 7 : index
    %c0_136 = arith.constant 0 : index
    %c0_137 = arith.constant 0 : index
    %171 = vector.load %arg2[%c7, %c0_136, %c0_137] : memref<8x32x4xf32, #tpu.memory_space<vmem>>, vector<1x32x4xf32>
    %172 = vector.shape_cast %171 : vector<1x32x4xf32> to vector<32x4xf32>
    %cst_138 = arith.constant dense<0.000000e+00> : vector<8x4xf32>
    %173 = tpu.matmul %1, %172, %cst_138 {dimension_numbers = #tpu.dot_dimension_numbers<[1], [0], [0], [1], [0, 0, 1, 1], [], []>} : vector<8x32xf32>, vector<32x4xf32>, vector<8x4xf32> -> vector<8x4xf32>
    %c7_139 = arith.constant 7 : index
    %c0_140 = arith.constant 0 : index
    %c0_141 = arith.constant 0 : index
    %174 = vector.load %arg3[%c7_139, %c0_140, %c0_141] : memref<8x32x4xf32, #tpu.memory_space<vmem>>, vector<1x32x4xf32>
    %175 = vector.shape_cast %174 : vector<1x32x4xf32> to vector<32x4xf32>
    %cst_142 = arith.constant dense<0.000000e+00> : vector<8x4xf32>
    %176 = tpu.matmul %1, %175, %cst_142 {dimension_numbers = #tpu.dot_dimension_numbers<[1], [0], [0], [1], [0, 0, 1, 1], [], []>} : vector<8x32xf32>, vector<32x4xf32>, vector<8x4xf32> -> vector<8x4xf32>
    %c7_143 = arith.constant 7 : index
    %c0_144 = arith.constant 0 : index
    %c0_145 = arith.constant 0 : index
    %177 = vector.load %arg4[%c7_143, %c0_144, %c0_145] : memref<8x32x4xf32, #tpu.memory_space<vmem>>, vector<1x32x4xf32>
    %178 = vector.shape_cast %177 : vector<1x32x4xf32> to vector<32x4xf32>
    %cst_146 = arith.constant dense<0.000000e+00> : vector<8x4xf32>
    %179 = tpu.matmul %1, %178, %cst_146 {dimension_numbers = #tpu.dot_dimension_numbers<[1], [0], [0], [1], [0, 0, 1, 1], [], []>} : vector<8x32xf32>, vector<32x4xf32>, vector<8x4xf32> -> vector<8x4xf32>
    %cst_147 = arith.constant dense<0.000000e+00> : vector<8x8xf32>
    %180 = tpu.matmul %173, %176, %cst_147 {dimension_numbers = #tpu.dot_dimension_numbers<[1], [1], [0], [0], [0, 0, 1, 0], [], []>} : vector<8x4xf32>, vector<8x4xf32>, vector<8x8xf32> -> vector<8x8xf32>
    %cst_148 = arith.constant dense<0xFF800000> : vector<8xf32>
    %181 = vector.multi_reduction <maximumf>, %180, %cst_148 [1] : vector<8x8xf32> to vector<8xf32>
    %182 = vector.shape_cast %181 : vector<8xf32> to vector<8x1xf32>
    %183 = vector.broadcast %182 : vector<8x1xf32> to vector<8x8xf32>
    %184 = arith.subf %180, %183 : vector<8x8xf32>
    %185 = math.exp %184 : vector<8x8xf32>
    %cst_149 = arith.constant dense<0.000000e+00> : vector<8xf32>
    %186 = vector.multi_reduction <add>, %185, %cst_149 [1] : vector<8x8xf32> to vector<8xf32>
    %187 = vector.shape_cast %186 : vector<8xf32> to vector<8x1xf32>
    %188 = vector.broadcast %187 : vector<8x1xf32> to vector<8x8xf32>
    %189 = arith.divf %185, %188 : vector<8x8xf32>
    %cst_150 = arith.constant dense<0.000000e+00> : vector<8x4xf32>
    %190 = tpu.matmul %189, %179, %cst_150 {dimension_numbers = #tpu.dot_dimension_numbers<[1], [0], [0], [1], [0, 0, 1, 1], [], []>} : vector<8x8xf32>, vector<8x4xf32>, vector<8x4xf32> -> vector<8x4xf32>
    %c7_151 = arith.constant 7 : index
    %c0_152 = arith.constant 0 : index
    %c0_153 = arith.constant 0 : index
    %191 = vector.load %arg5[%c7_151, %c0_152, %c0_153] : memref<8x4x32xf32, #tpu.memory_space<vmem>>, vector<1x4x32xf32>
    %192 = vector.shape_cast %191 : vector<1x4x32xf32> to vector<4x32xf32>
    %cst_154 = arith.constant dense<0.000000e+00> : vector<8x32xf32>
    %193 = tpu.matmul %190, %192, %cst_154 {dimension_numbers = #tpu.dot_dimension_numbers<[1], [0], [0], [1], [0, 0, 1, 1], [], []>} : vector<8x4xf32>, vector<4x32xf32>, vector<8x32xf32> -> vector<8x32xf32>
    %194 = arith.addf %170, %193 : vector<8x32xf32>
    %c0_155 = arith.constant 0 : index
    %c0_156 = arith.constant 0 : index
    %195 = vector.load %arg6[%c0_155, %c0_156] : memref<1x32xf32, #tpu.memory_space<vmem>>, vector<1x32xf32>
    %196 = vector.broadcast %195 : vector<1x32xf32> to vector<8x32xf32>
    %197 = arith.addf %194, %196 : vector<8x32xf32>
    %c0_157 = arith.constant 0 : index
    %c0_158 = arith.constant 0 : index
    %c0_159 = arith.constant 0 : index
    %198 = vector.load %arg7[%c0_157, %c0_158, %c0_159] : memref<1x8x32xf32, #tpu.memory_space<vmem>>, vector<1x8x32xf32>
    %199 = vector.shape_cast %198 : vector<1x8x32xf32> to vector<8x32xf32>
    %200 = vector.shape_cast %197 : vector<8x32xf32> to vector<1x8x32xf32>
    tpu.vector_store %arg7[%c0_157, %c0_158, %c0_159], %200 {strides = array<i32>} : memref<1x8x32xf32, #tpu.memory_space<vmem>>, vector<1x8x32xf32>,
    return
  }
  func.func @transform_0(%arg0: i32) -> (i32, i32, i32) {
    %c0_i32 = arith.constant 0 : i32
    %c0_i32_0 = arith.constant 0 : i32
    %c0_i32_1 = arith.constant 0 : i32
    return %arg0, %c0_i32, %c0_i32_0 : i32, i32, i32
  }
  func.func @transform_1(%arg0: i32) -> (i32, i32, i32) {
    %c0_i32 = arith.constant 0 : i32
    %c0_i32_0 = arith.constant 0 : i32
    %c0_i32_1 = arith.constant 0 : i32
    %c0_i32_2 = arith.constant 0 : i32
    return %c0_i32, %c0_i32_0, %c0_i32_1 : i32, i32, i32
  }
  func.func @transform_2(%arg0: i32) -> (i32, i32, i32) {
    %c0_i32 = arith.constant 0 : i32
    %c0_i32_0 = arith.constant 0 : i32
    %c0_i32_1 = arith.constant 0 : i32
    %c0_i32_2 = arith.constant 0 : i32
    return %c0_i32, %c0_i32_0, %c0_i32_1 : i32, i32, i32
  }
  func.func @transform_3(%arg0: i32) -> (i32, i32, i32) {
    %c0_i32 = arith.constant 0 : i32
    %c0_i32_0 = arith.constant 0 : i32
    %c0_i32_1 = arith.constant 0 : i32
    %c0_i32_2 = arith.constant 0 : i32
    return %c0_i32, %c0_i32_0, %c0_i32_1 : i32, i32, i32
  }
  func.func @transform_4(%arg0: i32) -> (i32, i32, i32) {
    %c0_i32 = arith.constant 0 : i32
    %c0_i32_0 = arith.constant 0 : i32
    %c0_i32_1 = arith.constant 0 : i32
    %c0_i32_2 = arith.constant 0 : i32
    return %c0_i32, %c0_i32_0, %c0_i32_1 : i32, i32, i32
  }
  func.func @transform_5(%arg0: i32) -> (i32, i32) {
    %c0_i32 = arith.constant 0 : i32
    %c0_i32_0 = arith.constant 0 : i32
    %c0_i32_1 = arith.constant 0 : i32
    return %c0_i32, %c0_i32_0 : i32, i32
  }
  func.func @transform_6(%arg0: i32) -> (i32, i32, i32) {
    %c0_i32 = arith.constant 0 : i32
    %c0_i32_0 = arith.constant 0 : i32
    %c0_i32_1 = arith.constant 0 : i32
    return %arg0, %c0_i32, %c0_i32_0 : i32, i32, i32
  }
}

</mosaic_0001>

<llo_original>
// kernel: tpu_custom_call.1
$region0: #{tpu_custom_call.1}
  #allocation0 [shape = 'u32[]', space=smem, size = 0x4, offset = 0x4, fixed_abs, tag = 'smem constant byte address 0x4 - core index']
  #allocation1 [shape = 'u32[72,128]{1,0:T(1,128)}', space=vmem, size = 0x9000, scoped, tag = 'internal scratch']
  %s0 = inlined_call_operand.vmem [shape: f32[2,8,32], index: 0, kind: input, shape index: {}]
  %s1 = inlined_call_operand.vmem [shape: f32[8,32,4], index: 1, kind: input, shape index: {}]
  %s2 = inlined_call_operand.vmem [shape: f32[8,32,4], index: 2, kind: input, shape index: {}]
  %s3 = inlined_call_operand.vmem [shape: f32[8,32,4], index: 3, kind: input, shape index: {}]
  %s4 = inlined_call_operand.vmem [shape: f32[8,4,32], index: 4, kind: input, shape index: {}]
  %s5 = inlined_call_operand.vmem [shape: f32[1,32], index: 5, kind: input, shape index: {}]
  %s6 = inlined_call_operand.hbm [shape: f32[2,8,32], index: 6, kind: output, shape index: {}]
  %s7 = sld [smem:[#allocation0]]
  $region57: #{tpu_custom_call.1} parent=0
    _
  %s9 = ssub.s32 1, %s7
  %s10 = scalar_select 0, %s9, %s7
  $region1: #{tpu_custom_call.1} parent=0
    #allocation2 [shape = 'u8[8192]{0}', space=vmem, size = 0x2000, scoped, tag = 'output window, operand 0']
    #allocation3 [shape = 's32[2]{0}', space=sflag, size = 0x8, scoped, tag = 'scoped memory for tpu_custom_call.1']
    %11 = vsyncpa [#allocation3], 0
    %s12 = scalar_lea.sflag [#allocation3], 1
    %13 = vsyncpa %s12, 0
    loop: start=0, step=1, limit=4
    $region2: #{tpu_custom_call.1} parent=1 // loop_pre_header
      _
    $region3: #{tpu_custom_call.1} parent=1 // loop_header
      %s15 = sphi 0, %s19
      %p16 = scmp.ge.s32.totalorder %s15, 4
      %s25 = sphi 0, %s27
      %s28 = sphi 0, %s25
      %s29 = sphi 0, %s28
      %s45 = sphi 0, %s29
      %s49 = sphi 0, %s49
      %s51 = sphi 0, %s49
      %s52 = sphi 0, %s51
      %s66 = sphi 0, %s52
      %s70 = sphi 0, %s70
      %s72 = sphi 0, %s70
      %s73 = sphi 0, %s72
      %s87 = sphi 0, %s73
      %s91 = sphi 0, %s91
      %s93 = sphi 0, %s91
      %s94 = sphi 0, %s93
      %s108 = sphi 0, %s94
      %s112 = sphi 0, %s112
      %s114 = sphi 0, %s112
      %s115 = sphi 0, %s114
      %s129 = sphi 0, %s115
      %s133 = sphi 0, %s133
      %s135 = sphi 0, %s133
      %s136 = sphi 0, %s135
      %s150 = sphi 0, %s136
      %s156 = sphi 0, %s158
      %s159 = sphi 0, %s156
      %s160 = sphi 0, %s159
      %s176 = sphi 0, %s160
    $region4: #{tpu_custom_call.1} parent=1 // loop_header_branch
      %18 = sbr.rel (%p16) target = $region8
    $region5: #{tpu_custom_call.1} parent=1 // loop_body
      %s20 = ssub.s32 %s15, 1
      %s21 = ssub.s32 %s15, 2
      %s22 = sadd.s32 %s15, 1
      %s23 = ssub.s32 %s15, %s22
      %p24 = scmp.eq.s32.totalorder %s23, 0
      %s26 = sadd.s32 %s25, 1
      %s27 = scalar_select %p24, %s25, %s26
      %p30 = pneg %p24
      %p31 = scmp.eq.s32.totalorder %s15, 1
      %p32 = por %p30, %p31
      %p33 = scmp.ne.s32.totalorder %s25, %s28
      %p34 = scmp.eq.s32.totalorder %s15, 0
      %p35 = por %p33, %p34
      %p36 = scmp.ne.s32.totalorder %s25, %s28
      %p37 = scmp.eq.s32.totalorder %s20, 1
      %p38 = por %p36, %p37
      %p39 = scmp.ne.s32.totalorder %s28, %s29
      %p40 = scmp.eq.s32.totalorder %s20, 0
      %p41 = por %p39, %p40
      %p42 = scmp.ne.s32.totalorder %s28, %s29
      %p43 = scmp.eq.s32.totalorder %s21, 1
      %p44 = por %p42, %p43
      %p46 = scmp.ne.s32.totalorder %s29, %s45
      %p47 = scmp.eq.s32.totalorder %s21, 0
      %p48 = por %p46, %p47
      %s50 = sadd.s32 %s49, 1
      %p53 = scmp.eq.s32.totalorder %s15, 1
      %p54 = scmp.ne.s32.totalorder %s49, %s51
      %p55 = scmp.eq.s32.totalorder %s15, 0
      %p56 = por %p54, %p55
      %p57 = scmp.ne.s32.totalorder %s49, %s51
      %p58 = scmp.eq.s32.totalorder %s20, 1
      %p59 = por %p57, %p58
      %p60 = scmp.ne.s32.totalorder %s51, %s52
      %p61 = scmp.eq.s32.totalorder %s20, 0
      %p62 = por %p60, %p61
      %p63 = scmp.ne.s32.totalorder %s51, %s52
      %p64 = scmp.eq.s32.totalorder %s21, 1
      %p65 = por %p63, %p64
      %p67 = scmp.ne.s32.totalorder %s52, %s66
      %p68 = scmp.eq.s32.totalorder %s21, 0
      %p69 = por %p67, %p68
      %s71 = sadd.s32 %s70, 1
      %p74 = scmp.eq.s32.totalorder %s15, 1
      %p75 = scmp.ne.s32.totalorder %s70, %s72
      %p76 = scmp.eq.s32.totalorder %s15, 0
      %p77 = por %p75, %p76
      %p78 = scmp.ne.s32.totalorder %s70, %s72
      %p79 = scmp.eq.s32.totalorder %s20, 1
      %p80 = por %p78, %p79
      %p81 = scmp.ne.s32.totalorder %s72, %s73
      %p82 = scmp.eq.s32.totalorder %s20, 0
      %p83 = por %p81, %p82
      %p84 = scmp.ne.s32.totalorder %s72, %s73
      %p85 = scmp.eq.s32.totalorder %s21, 1
      %p86 = por %p84, %p85
      %p88 = scmp.ne.s32.totalorder %s73, %s87
      %p89 = scmp.eq.s32.totalorder %s21, 0
      %p90 = por %p88, %p89
      %s92 = sadd.s32 %s91, 1
      %p95 = scmp.eq.s32.totalorder %s15, 1
      %p96 = scmp.ne.s32.totalorder %s91, %s93
      %p97 = scmp.eq.s32.totalorder %s15, 0
      %p98 = por %p96, %p97
      %p99 = scmp.ne.s32.totalorder %s91, %s93
      %p100 = scmp.eq.s32.totalorder %s20, 1
      %p101 = por %p99, %p100
      %p102 = scmp.ne.s32.totalorder %s93, %s94
      %p103 = scmp.eq.s32.totalorder %s20, 0
      %p104 = por %p102, %p103
      %p105 = scmp.ne.s32.totalorder %s93, %s94
      %p106 = scmp.eq.s32.totalorder %s21, 1
      %p107 = por %p105, %p106
      %p109 = scmp.ne.s32.totalorder %s94, %s108
      %p110 = scmp.eq.s32.totalorder %s21, 0
      %p111 = por %p109, %p110
      %s113 = sadd.s32 %s112, 1
      %p116 = scmp.eq.s32.totalorder %s15, 1
      %p117 = scmp.ne.s32.totalorder %s112, %s114
      %p118 = scmp.eq.s32.totalorder %s15, 0
      %p119 = por %p117, %p118
      %p120 = scmp.ne.s32.totalorder %s112, %s114
      %p121 = scmp.eq.s32.totalorder %s20, 1
      %p122 = por %p120, %p121
      %p123 = scmp.ne.s32.totalorder %s114, %s115
      %p124 = scmp.eq.s32.totalorder %s20, 0
      %p125 = por %p123, %p124
      %p126 = scmp.ne.s32.totalorder %s114, %s115
      %p127 = scmp.eq.s32.totalorder %s21, 1
      %p128 = por %p126, %p127
      %p130 = scmp.ne.s32.totalorder %s115, %s129
      %p131 = scmp.eq.s32.totalorder %s21, 0
      %p132 = por %p130, %p131
      %s134 = sadd.s32 %s133, 1
      %p137 = scmp.eq.s32.totalorder %s15, 1
      %p138 = scmp.ne.s32.totalorder %s133, %s135
      %p139 = scmp.eq.s32.totalorder %s15, 0
      %p140 = por %p138, %p139
      %p141 = scmp.ne.s32.totalorder %s133, %s135
      %p142 = scmp.eq.s32.totalorder %s20, 1
      %p143 = por %p141, %p142
      %p144 = scmp.ne.s32.totalorder %s135, %s136
      %p145 = scmp.eq.s32.totalorder %s20, 0
      %p146 = por %p144, %p145
      %p147 = scmp.ne.s32.totalorder %s135, %s136
      %p148 = scmp.eq.s32.totalorder %s21, 1
      %p149 = por %p147, %p148
      %p151 = scmp.ne.s32.totalorder %s136, %s150
      %p152 = scmp.eq.s32.totalorder %s21, 0
      %p153 = por %p151, %p152
      %s154 = ssub.s32 %s15, %s22
      %p155 = scmp.eq.s32.totalorder %s154, 0
      %s157 = sadd.s32 %s156, 1
      %s158 = scalar_select %p155, %s156, %s157
      %p161 = pneg %p155
      %p162 = scmp.eq.s32.totalorder %s15, 1
      %p163 = por %p161, %p162
      %p164 = scmp.ne.s32.totalorder %s156, %s159
      %p165 = scmp.eq.s32.totalorder %s15, 0
      %p166 = por %p164, %p165
      %p167 = scmp.ne.s32.totalorder %s156, %s159
      %p168 = scmp.eq.s32.totalorder %s20, 1
      %p169 = por %p167, %p168
      %p170 = scmp.ne.s32.totalorder %s159, %s160
      %p171 = scmp.eq.s32.totalorder %s20, 0
      %p172 = por %p170, %p171
      %p173 = scmp.ne.s32.totalorder %s159, %s160
      %p174 = scmp.eq.s32.totalorder %s21, 1
      %p175 = por %p173, %p174
      %p177 = scmp.ne.s32.totalorder %s160, %s176
      %p178 = scmp.eq.s32.totalorder %s21, 0
      %p179 = por %p177, %p178
      %p180 = scmp.le.s32.totalorder 1, %s15
      %p181 = scmp.lt.s32.totalorder %s15, 3
      %p182 = pnand %p180, %p181
      %p183 = pneg %p182
      // Predicated region
      $region9: #{tpu_custom_call.1} parent=5 // pred_check
        _
      $region10: #{tpu_custom_call.1} parent=5 // pred_check_branch
        %185 = sbr.rel (%p182) target = $region12
      $region11: #{tpu_custom_call.1} parent=5 // pred_region
        %s186 = ssub.s32 %s15, 1
        // Predicated region
        $region13: #{tpu_custom_call.1} parent=11 // pred_check
          %p187 = pneg %p62
        $region14: #{tpu_custom_call.1} parent=11 // pred_check_branch
          %189 = sbr.rel (%p187) target = $region16
        $region15: #{tpu_custom_call.1} parent=11 // pred_region
          _
        $region16: #{tpu_custom_call.1} parent=11 // pred_fallthru
          _
        // Predicated region
        $region17: #{tpu_custom_call.1} parent=11 // pred_check
          %p190 = pneg %p83
        $region18: #{tpu_custom_call.1} parent=11 // pred_check_branch
          %192 = sbr.rel (%p190) target = $region20
        $region19: #{tpu_custom_call.1} parent=11 // pred_region
          _
        $region20: #{tpu_custom_call.1} parent=11 // pred_fallthru
          _
        // Predicated region
        $region21: #{tpu_custom_call.1} parent=11 // pred_check
          %p193 = pneg %p104
        $region22: #{tpu_custom_call.1} parent=11 // pred_check_branch
          %195 = sbr.rel (%p193) target = $region24
        $region23: #{tpu_custom_call.1} parent=11 // pred_region
          _
        $region24: #{tpu_custom_call.1} parent=11 // pred_fallthru
          _
        // Predicated region
        $region25: #{tpu_custom_call.1} parent=11 // pred_check
          %p196 = pneg %p125
        $region26: #{tpu_custom_call.1} parent=11 // pred_check_branch
          %198 = sbr.rel (%p196) target = $region28
        $region27: #{tpu_custom_call.1} parent=11 // pred_region
          _
        $region28: #{tpu_custom_call.1} parent=11 // pred_fallthru
          _
        // Predicated region
        $region29: #{tpu_custom_call.1} parent=11 // pred_check
          %p199 = pneg %p146
        $region30: #{tpu_custom_call.1} parent=11 // pred_check_branch
          %201 = sbr.rel (%p199) target = $region32
        $region31: #{tpu_custom_call.1} parent=11 // pred_region
          _
        $region32: #{tpu_custom_call.1} parent=11 // pred_fallthru
          _
      $region12: #{tpu_custom_call.1} parent=5 // pred_fallthru
        _
      %p202 = scmp.lt.s32.totalorder %s15, 2
      // Predicated region
      $region33: #{tpu_custom_call.1} parent=5 // pred_check
        %p203 = pneg %p202
      $region34: #{tpu_custom_call.1} parent=5 // pred_check_branch
        %205 = sbr.rel (%p203) target = $region36
      $region35: #{tpu_custom_call.1} parent=5 // pred_region
        // Predicated region
        $region37: #{tpu_custom_call.1} parent=35 // pred_check
          %p206 = pneg %p35
        $region38: #{tpu_custom_call.1} parent=35 // pred_check_branch
          %208 = sbr.rel (%p206) target = $region40
        $region39: #{tpu_custom_call.1} parent=35 // pred_region
          %p209 = scmp.lt.s32.totalorder %s15, 1
          %s210 = scalar_select %p209, %s15, 1
          %s211 = smul.addr %s210, 8
          %s212 = scalar_lea.vmem %s0, %s211
        $region40: #{tpu_custom_call.1} parent=35 // pred_fallthru
          _
      $region36: #{tpu_custom_call.1} parent=5 // pred_fallthru
        _
      %p213 = scmp.le.s32.totalorder 1, %s15
      %p214 = scmp.lt.s32.totalorder %s15, 3
      %p215 = pnand %p213, %p214
      %p216 = pneg %p215
      // Predicated region
      $region41: #{tpu_custom_call.1} parent=5 // pred_check
        _
      $region42: #{tpu_custom_call.1} parent=5 // pred_check_branch
        %218 = sbr.rel (%p215) target = $region44
      $region43: #{tpu_custom_call.1} parent=5 // pred_region
        %s219 = ssub.s32 %s15, 1
        %p220 = scmp.lt.s32.totalorder %s20, 1
        %s221 = scalar_select %p220, %s20, 1
        %s222 = smul.addr %s221, 8
        %s223 = scalar_lea.vmem %s0, %s222
        %p224 = pneg %p41
        %p225 = pneg %p38
        %p226 = pneg %p62
        %p227 = pneg %p59
        %p228 = pneg %p83
        %p229 = pneg %p80
        %p230 = pneg %p104
        %p231 = pneg %p101
        %p232 = pneg %p125
        %p233 = pneg %p122
        %p234 = pneg %p146
        %p235 = pneg %p143
        %p236 = pneg %p172
        %p237 = pneg %p169
        %s238 = sand.u32 %s159, 1
        %s239 = scalar_lea.sflag [#allocation3], %s238
        %s240 = sand.u32 %s159, 1
        %s241 = smul.addr %s240, 8
        %s242 = scalar_lea.vmem [#allocation2], %s241
        %p243 = scmp.lt.s32.totalorder %s20, 1
        %s244 = scalar_select %p243, %s20, 1
        %s245 = smul.addr %s244, 8
        %s246 = scalar_lea.vmem %s0, %s245
        %v247 = vld [vmem:[%s246] sm:$0xff]
        %v248 = vld [vmem:[%s1] sm:$0xff]
        %v249 = vld [vmem:[%s1 + $0x8] sm:$0xff]
        %v250 = vld [vmem:[%s1 + $0x10] sm:$0xff]
        %v251 = vld [vmem:[%s1 + $0x18] sm:$0xff]
        %vm252 = vcmask 261120
        %v254 = vsel %vm252, %v247, 0
        %256 = vmatpush.msra.mxu0 0.0
        %257 = vmatpush.msra.mxu0 0.0
        %258 = vmatpush.msra.mxu0 0.0
        %259 = vmatpush.msra.mxu0 0.0
        %260 = vmatpush.msra.mxu0 0.0
        %261 = vmatpush.msra.mxu0 0.0
        %262 = vmatpush.msra.mxu0 0.0
        %263 = vmatpush.msra.mxu0 0.0
        %264 = vmatpush.msra.mxu0 0.0
        %265 = vmatpush.msra.mxu0 0.0
        %266 = vmatpush.msra.mxu0 0.0
        %267 = vmatpush.msra.mxu0 0.0
        %268 = vmatpush.msra.mxu0 %v251
        %269 = vmatpush.msra.mxu0 %v250
        %270 = vmatpush.msra.mxu0 %v249
        %271 = vmatpush.msra.mxu0 %v248
        %272 = vmatmul.f32.gmra.mxu0 %v254
        %v273 = vpop.f32.mrf.mxu0
        %v274 = vadd.f32 0.0, %v273
        %275 = vdwg.mxu0
        %v276 = vld [vmem:[%s2] sm:$0xff]
        %v277 = vld [vmem:[%s2 + $0x8] sm:$0xff]
        %v278 = vld [vmem:[%s2 + $0x10] sm:$0xff]
        %v279 = vld [vmem:[%s2 + $0x18] sm:$0xff]
        %280 = vmatpush.msra.mxu0 0.0
        %281 = vmatpush.msra.mxu0 0.0
        %282 = vmatpush.msra.mxu0 0.0
        %283 = vmatpush.msra.mxu0 0.0
        %284 = vmatpush.msra.mxu0 0.0
        %285 = vmatpush.msra.mxu0 0.0
        %286 = vmatpush.msra.mxu0 0.0
        %287 = vmatpush.msra.mxu0 0.0
        %288 = vmatpush.msra.mxu0 0.0
        %289 = vmatpush.msra.mxu0 0.0
        %290 = vmatpush.msra.mxu0 0.0
        %291 = vmatpush.msra.mxu0 0.0
        %292 = vmatpush.msra.mxu0 %v279
        %293 = vmatpush.msra.mxu0 %v278
        %294 = vmatpush.msra.mxu0 %v277
        %295 = vmatpush.msra.mxu0 %v276
        %296 = vmatmul.f32.gmra.mxu0 %v254
        %v297 = vpop.f32.mrf.mxu0
        %v298 = vadd.f32 0.0, %v297
        %299 = vdwg.mxu0
        %v300 = vld [vmem:[%s3] sm:$0xff]
        %v301 = vld [vmem:[%s3 + $0x8] sm:$0xff]
        %v302 = vld [vmem:[%s3 + $0x10] sm:$0xff]
        %v303 = vld [vmem:[%s3 + $0x18] sm:$0xff]
        %304 = vmatpush.msra.mxu0 0.0
        %305 = vmatpush.msra.mxu0 0.0
        %306 = vmatpush.msra.mxu0 0.0
        %307 = vmatpush.msra.mxu0 0.0
        %308 = vmatpush.msra.mxu0 0.0
        %309 = vmatpush.msra.mxu0 0.0
        %310 = vmatpush.msra.mxu0 0.0
        %311 = vmatpush.msra.mxu0 0.0
        %312 = vmatpush.msra.mxu0 0.0
        %313 = vmatpush.msra.mxu0 0.0
        %314 = vmatpush.msra.mxu0 0.0
        %315 = vmatpush.msra.mxu0 0.0
        %316 = vmatpush.msra.mxu0 %v303
        %317 = vmatpush.msra.mxu0 %v302
        %318 = vmatpush.msra.mxu0 %v301
        %319 = vmatpush.msra.mxu0 %v300
        %320 = vmatmul.f32.gmra.mxu0 %v254
        %v321 = vpop.f32.mrf.mxu0
        %v322 = vadd.f32 0.0, %v321
        %323 = vdwg.mxu0
        %vm324 = vcmask 31744
        %v326 = vsel %vm324, %v274, 0
        %v329 = vsel %vm324, %v298, 0
        %331 = vmatpush.xpose.msra.mxu0 0.0
        %332 = vmatpush.xpose.msra.mxu0 0.0
        %333 = vmatpush.xpose.msra.mxu0 0.0
        %334 = vmatpush.xpose.msra.mxu0 0.0
        %335 = vmatpush.xpose.msra.mxu0 0.0
        %336 = vmatpush.xpose.msra.mxu0 0.0
        %337 = vmatpush.xpose.msra.mxu0 0.0
        %338 = vmatpush.xpose.msra.mxu0 0.0
        %339 = vmatpush.xpose.msra.mxu0 0.0
        %340 = vmatpush.xpose.msra.mxu0 0.0
        %341 = vmatpush.xpose.msra.mxu0 0.0
        %342 = vmatpush.xpose.msra.mxu0 0.0
        %343 = vmatpush.xpose.msra.mxu0 0.0
        %344 = vmatpush.xpose.msra.mxu0 0.0
        %345 = vmatpush.xpose.msra.mxu0 0.0
        %346 = vmatpush.xpose.msra.mxu0 %v329
        %347 = vmatmul.f32.gmra.mxu0 %v326
        %v348 = vpop.f32.mrf.mxu0
        %v349 = vadd.f32 0.0, %v348
        %350 = vdwg.mxu0
        %vm351 = vcmask 64512
        %v352 = vsel %vm351, %v349, -inf
        %353 = vmax.xlane.f32.xlu0 %v352
        %v354 = vpop.xlane.xlu0 %353
        %v355 = vsub.f32 %v349, %v354
        %v356 = vmul.f32 %v355, 1.442695
        %v357 = vpow.pop %v356
        %v358 = vsel %vm351, %v357, 0.0
        %359 = vadd.xlane.f32.xlu0 %v358
        %v360 = vpop.xlane.xlu0 %359
        %v361 = vrcp.pop %v360
        %v362 = vmul.f32 %v360, %v361
        %v363 = vsub.f32 1.0, %v362
        %v364 = vmul.f32 %v361, %v363
        %v365 = vadd.f32 %v361, %v364
        %vm366 = vweird.f32 %v360
        %vm367 = vweird.f32 %v361
        %vm368 = vmor %vm366, %vm367
        %v369 = vsel %vm368, %v361, %v365
        %v370 = vand.u32 2147483647, %v360
        %vm371 = vcmp.eq.f32.partialorder %v370, 8.507059e+37
        %v372 = vand.u32 %v360, 2147483648
        %v373 = vor.u32 1.1754944e-38, %v372
        %v374 = vsel %vm371, %v373, %v369
        %v375 = vmul.f32 %v357, %v374
        %v377 = vsel %vm351, %v375, 0
        %379 = vmatpush.msra.mxu0 0.0
        %380 = vmatpush.msra.mxu0 0.0
        %381 = vmatpush.msra.mxu0 0.0
        %382 = vmatpush.msra.mxu0 0.0
        %383 = vmatpush.msra.mxu0 0.0
        %384 = vmatpush.msra.mxu0 0.0
        %385 = vmatpush.msra.mxu0 0.0
        %386 = vmatpush.msra.mxu0 0.0
        %387 = vmatpush.msra.mxu0 0.0
        %388 = vmatpush.msra.mxu0 0.0
        %389 = vmatpush.msra.mxu0 0.0
        %390 = vmatpush.msra.mxu0 0.0
        %391 = vmatpush.msra.mxu0 0.0
        %392 = vmatpush.msra.mxu0 0.0
        %393 = vmatpush.msra.mxu0 0.0
        %394 = vmatpush.msra.mxu0 %v322
        %395 = vmatmul.f32.gmra.mxu0 %v377
        %v396 = vpop.f32.mrf.mxu0
        %v397 = vadd.f32 0.0, %v396
        %398 = vdwg.mxu0
        %v399 = vld [vmem:[%s4] sm:$0xf]
        %s400 = scalar_lea.vmem %s1, 32
        %v401 = vld [vmem:[%s400] sm:$0xff]
        %v402 = vld [vmem:[%s400 + $0x8] sm:$0xff]
        %v403 = vld [vmem:[%s400 + $0x10] sm:$0xff]
        %v404 = vld [vmem:[%s400 + $0x18] sm:$0xff]
        %405 = vmatpush.msra.mxu0 0.0
        %406 = vmatpush.msra.mxu0 0.0
        %407 = vmatpush.msra.mxu0 0.0
        %408 = vmatpush.msra.mxu0 0.0
        %409 = vmatpush.msra.mxu0 0.0
        %410 = vmatpush.msra.mxu0 0.0
        %411 = vmatpush.msra.mxu0 0.0
        %412 = vmatpush.msra.mxu0 0.0
        %413 = vmatpush.msra.mxu0 0.0
        %414 = vmatpush.msra.mxu0 0.0
        %415 = vmatpush.msra.mxu0 0.0
        %416 = vmatpush.msra.mxu0 0.0
        %417 = vmatpush.msra.mxu0 %v404
        %418 = vmatpush.msra.mxu0 %v403
        %419 = vmatpush.msra.mxu0 %v402
        %420 = vmatpush.msra.mxu0 %v401
        %421 = vmatmul.f32.gmra.mxu0 %v254
        %v422 = vpop.f32.mrf.mxu0
        %v423 = vadd.f32 0.0, %v422
        %424 = vdwg.mxu0
        %s425 = scalar_lea.vmem %s2, 32
        %v426 = vld [vmem:[%s425] sm:$0xff]
        %v427 = vld [vmem:[%s425 + $0x8] sm:$0xff]
        %v428 = vld [vmem:[%s425 + $0x10] sm:$0xff]
        %v429 = vld [vmem:[%s425 + $0x18] sm:$0xff]
        %430 = vmatpush.msra.mxu0 0.0
        %431 = vmatpush.msra.mxu0 0.0
        %432 = vmatpush.msra.mxu0 0.0
        %433 = vmatpush.msra.mxu0 0.0
        %434 = vmatpush.msra.mxu0 0.0
        %435 = vmatpush.msra.mxu0 0.0
        %436 = vmatpush.msra.mxu0 0.0
        %437 = vmatpush.msra.mxu0 0.0
        %438 = vmatpush.msra.mxu0 0.0
        %439 = vmatpush.msra.mxu0 0.0
        %440 = vmatpush.msra.mxu0 0.0
        %441 = vmatpush.msra.mxu0 0.0
        %442 = vmatpush.msra.mxu0 %v429
        %443 = vmatpush.msra.mxu0 %v428
        %444 = vmatpush.msra.mxu0 %v427
        %445 = vmatpush.msra.mxu0 %v426
        %446 = vmatmul.f32.gmra.mxu0 %v254
        %v447 = vpop.f32.mrf.mxu0
        %v448 = vadd.f32 0.0, %v447
        %449 = vdwg.mxu0
        %s450 = scalar_lea.vmem %s3, 32
        %v451 = vld [vmem:[%s450] sm:$0xff]
        %v452 = vld [vmem:[%s450 + $0x8] sm:$0xff]
        %v453 = vld [vmem:[%s450 + $0x10] sm:$0xff]
        %v454 = vld [vmem:[%s450 + $0x18] sm:$0xff]
        %455 = vmatpush.msra.mxu0 0.0
        %456 = vmatpush.msra.mxu0 0.0
        %457 = vmatpush.msra.mxu0 0.0
        %458 = vmatpush.msra.mxu0 0.0
        %459 = vmatpush.msra.mxu0 0.0
        %460 = vmatpush.msra.mxu0 0.0
        %461 = vmatpush.msra.mxu0 0.0
        %462 = vmatpush.msra.mxu0 0.0
        %463 = vmatpush.msra.mxu0 0.0
        %464 = vmatpush.msra.mxu0 0.0
        %465 = vmatpush.msra.mxu0 0.0
        %466 = vmatpush.msra.mxu0 0.0
        %467 = vmatpush.msra.mxu0 %v454
        %468 = vmatpush.msra.mxu0 %v453
        %469 = vmatpush.msra.mxu0 %v452
        %470 = vmatpush.msra.mxu0 %v451
        %471 = vmatmul.f32.gmra.mxu0 %v254
        %v472 = vpop.f32.mrf.mxu0
        %v473 = vadd.f32 0.0, %v472
        %474 = vdwg.mxu0
        %v476 = vsel %vm324, %v423, 0
        %v479 = vsel %vm324, %v448, 0
        %481 = vmatpush.xpose.msra.mxu0 0.0
        %482 = vmatpush.xpose.msra.mxu0 0.0
        %483 = vmatpush.xpose.msra.mxu0 0.0
        %484 = vmatpush.xpose.msra.mxu0 0.0
        %485 = vmatpush.xpose.msra.mxu0 0.0
        %486 = vmatpush.xpose.msra.mxu0 0.0
        %487 = vmatpush.xpose.msra.mxu0 0.0
        %488 = vmatpush.xpose.msra.mxu0 0.0
        %489 = vmatpush.xpose.msra.mxu0 0.0
        %490 = vmatpush.xpose.msra.mxu0 0.0
        %491 = vmatpush.xpose.msra.mxu0 0.0
        %492 = vmatpush.xpose.msra.mxu0 0.0
        %493 = vmatpush.xpose.msra.mxu0 0.0
        %494 = vmatpush.xpose.msra.mxu0 0.0
        %495 = vmatpush.xpose.msra.mxu0 0.0
        %496 = vmatpush.xpose.msra.mxu0 %v479
        %497 = vmatmul.f32.gmra.mxu0 %v476
        %v498 = vpop.f32.mrf.mxu0
        %v499 = vadd.f32 0.0, %v498
        %500 = vdwg.mxu0
        %v501 = vsel %vm351, %v499, -inf
        %502 = vmax.xlane.f32.xlu0 %v501
        %v503 = vpop.xlane.xlu0 %502
        %v504 = vsub.f32 %v499, %v503
        %v505 = vmul.f32 %v504, 1.442695
        %v506 = vpow.pop %v505
        %v507 = vsel %vm351, %v506, 0.0
        %508 = vadd.xlane.f32.xlu0 %v507
        %v509 = vpop.xlane.xlu0 %508
        %v510 = vrcp.pop %v509
        %v511 = vmul.f32 %v509, %v510
        %v512 = vsub.f32 1.0, %v511
        %v513 = vmul.f32 %v510, %v512
        %v514 = vadd.f32 %v510, %v513
        %vm515 = vweird.f32 %v509
        %vm516 = vweird.f32 %v510
        %vm517 = vmor %vm515, %vm516
        %v518 = vsel %vm517, %v510, %v514
        %v519 = vand.u32 2147483647, %v509
        %vm520 = vcmp.eq.f32.partialorder %v519, 8.507059e+37
        %v521 = vand.u32 %v509, 2147483648
        %v522 = vor.u32 1.1754944e-38, %v521
        %v523 = vsel %vm520, %v522, %v518
        %v524 = vmul.f32 %v506, %v523
        %v526 = vsel %vm351, %v524, 0
        %528 = vmatpush.msra.mxu0 0.0
        %529 = vmatpush.msra.mxu0 0.0
        %530 = vmatpush.msra.mxu0 0.0
        %531 = vmatpush.msra.mxu0 0.0
        %532 = vmatpush.msra.mxu0 0.0
        %533 = vmatpush.msra.mxu0 0.0
        %534 = vmatpush.msra.mxu0 0.0
        %535 = vmatpush.msra.mxu0 0.0
        %536 = vmatpush.msra.mxu0 0.0
        %537 = vmatpush.msra.mxu0 0.0
        %538 = vmatpush.msra.mxu0 0.0
        %539 = vmatpush.msra.mxu0 0.0
        %540 = vmatpush.msra.mxu0 0.0
        %541 = vmatpush.msra.mxu0 0.0
        %542 = vmatpush.msra.mxu0 0.0
        %543 = vmatpush.msra.mxu0 %v473
        %544 = vmatmul.f32.gmra.mxu0 %v526
        %v545 = vpop.f32.mrf.mxu0
        %v546 = vadd.f32 0.0, %v545
        %547 = vdwg.mxu0
        %s548 = scalar_lea.vmem %s4, 4
        %v549 = vld [vmem:[%s548] sm:$0xf]
        %v551 = vsel %vm324, %v546, 0
        %vm553 = vcmask 1043456
        %v555 = vsel %vm553, %v549, 0
        %557 = vmatpush.msra.mxu0 0.0
        %558 = vmatpush.msra.mxu0 0.0
        %559 = vmatpush.msra.mxu0 0.0
        %560 = vmatpush.msra.mxu0 0.0
        %561 = vmatpush.msra.mxu0 0.0
        %562 = vmatpush.msra.mxu0 0.0
        %563 = vmatpush.msra.mxu0 0.0
        %564 = vmatpush.msra.mxu0 0.0
        %565 = vmatpush.msra.mxu0 0.0
        %566 = vmatpush.msra.mxu0 0.0
        %567 = vmatpush.msra.mxu0 0.0
        %568 = vmatpush.msra.mxu0 0.0
        %569 = vmatpush.msra.mxu0 0.0
        %570 = vmatpush.msra.mxu0 0.0
        %571 = vmatpush.msra.mxu0 0.0
        %572 = vmatpush.msra.mxu0 %v555
        %573 = vmatmul.f32.gmra.mxu0 %v551
        %v574 = vpop.f32.mrf.mxu0
        %v575 = vadd.f32 0.0, %v574
        %576 = vdwg.mxu0
        %v578 = vsel %vm324, %v397, 0
        %v581 = vsel %vm553, %v399, 0
        %583 = vmatpush.msra.mxu0 0.0
        %584 = vmatpush.msra.mxu0 0.0
        %585 = vmatpush.msra.mxu0 0.0
        %586 = vmatpush.msra.mxu0 0.0
        %587 = vmatpush.msra.mxu0 0.0
        %588 = vmatpush.msra.mxu0 0.0
        %589 = vmatpush.msra.mxu0 0.0
        %590 = vmatpush.msra.mxu0 0.0
        %591 = vmatpush.msra.mxu0 0.0
        %592 = vmatpush.msra.mxu0 0.0
        %593 = vmatpush.msra.mxu0 0.0
        %594 = vmatpush.msra.mxu0 0.0
        %595 = vmatpush.msra.mxu0 0.0
        %596 = vmatpush.msra.mxu0 0.0
        %597 = vmatpush.msra.mxu0 0.0
        %598 = vmatpush.msra.mxu0 %v581
        %599 = vmatmul.f32.gmra.mxu0 %v578
        %v600 = vpop.f32.mrf.mxu0
        %v601 = vadd.f32 %v575, %v600
        %602 = vdwg.mxu0
        %s603 = scalar_lea.vmem %s1, 64
        %v604 = vld [vmem:[%s603] sm:$0xff]
        %v605 = vld [vmem:[%s603 + $0x8] sm:$0xff]
        %v606 = vld [vmem:[%s603 + $0x10] sm:$0xff]
        %v607 = vld [vmem:[%s603 + $0x18] sm:$0xff]
        %608 = vmatpush.msra.mxu0 0.0
        %609 = vmatpush.msra.mxu0 0.0
        %610 = vmatpush.msra.mxu0 0.0
        %611 = vmatpush.msra.mxu0 0.0
        %612 = vmatpush.msra.mxu0 0.0
        %613 = vmatpush.msra.mxu0 0.0
        %614 = vmatpush.msra.mxu0 0.0
        %615 = vmatpush.msra.mxu0 0.0
        %616 = vmatpush.msra.mxu0 0.0
        %617 = vmatpush.msra.mxu0 0.0
        %618 = vmatpush.msra.mxu0 0.0
        %619 = vmatpush.msra.mxu0 0.0
        %620 = vmatpush.msra.mxu0 %v607
        %621 = vmatpush.msra.mxu0 %v606
        %622 = vmatpush.msra.mxu0 %v605
        %623 = vmatpush.msra.mxu0 %v604
        %624 = vmatmul.f32.gmra.mxu0 %v254
        %v625 = vpop.f32.mrf.mxu0
        %v626 = vadd.f32 0.0, %v625
        %627 = vdwg.mxu0
        %s628 = scalar_lea.vmem %s2, 64
        %v629 = vld [vmem:[%s628] sm:$0xff]
        %v630 = vld [vmem:[%s628 + $0x8] sm:$0xff]
        %v631 = vld [vmem:[%s628 + $0x10] sm:$0xff]
        %v632 = vld [vmem:[%s628 + $0x18] sm:$0xff]
        %633 = vmatpush.msra.mxu0 0.0
        %634 = vmatpush.msra.mxu0 0.0
        %635 = vmatpush.msra.mxu0 0.0
        %636 = vmatpush.msra.mxu0 0.0
        %637 = vmatpush.msra.mxu0 0.0
        %638 = vmatpush.msra.mxu0 0.0
        %639 = vmatpush.msra.mxu0 0.0
        %640 = vmatpush.msra.mxu0 0.0
        %641 = vmatpush.msra.mxu0 0.0
        %642 = vmatpush.msra.mxu0 0.0
        %643 = vmatpush.msra.mxu0 0.0
        %644 = vmatpush.msra.mxu0 0.0
        %645 = vmatpush.msra.mxu0 %v632
        %646 = vmatpush.msra.mxu0 %v631
        %647 = vmatpush.msra.mxu0 %v630
        %648 = vmatpush.msra.mxu0 %v629
        %649 = vmatmul.f32.gmra.mxu0 %v254
        %v650 = vpop.f32.mrf.mxu0
        %v651 = vadd.f32 0.0, %v650
        %652 = vdwg.mxu0
        %s653 = scalar_lea.vmem %s3, 64
        %v654 = vld [vmem:[%s653] sm:$0xff]
        %v655 = vld [vmem:[%s653 + $0x8] sm:$0xff]
        %v656 = vld [vmem:[%s653 + $0x10] sm:$0xff]
        %v657 = vld [vmem:[%s653 + $0x18] sm:$0xff]
        %658 = vmatpush.msra.mxu0 0.0
        %659 = vmatpush.msra.mxu0 0.0
        %660 = vmatpush.msra.mxu0 0.0
        %661 = vmatpush.msra.mxu0 0.0
        %662 = vmatpush.msra.mxu0 0.0
        %663 = vmatpush.msra.mxu0 0.0
        %664 = vmatpush.msra.mxu0 0.0
        %665 = vmatpush.msra.mxu0 0.0
        %666 = vmatpush.msra.mxu0 0.0
        %667 = vmatpush.msra.mxu0 0.0
        %668 = vmatpush.msra.mxu0 0.0
        %669 = vmatpush.msra.mxu0 0.0
        %670 = vmatpush.msra.mxu0 %v657
        %671 = vmatpush.msra.mxu0 %v656
        %672 = vmatpush.msra.mxu0 %v655
        %673 = vmatpush.msra.mxu0 %v654
        %674 = vmatmul.f32.gmra.mxu0 %v254
        %v675 = vpop.f32.mrf.mxu0
        %v676 = vadd.f32 0.0, %v675
        %677 = vdwg.mxu0
        %v679 = vsel %vm324, %v626, 0
        %v682 = vsel %vm324, %v651, 0
        %684 = vmatpush.xpose.msra.mxu0 0.0
        %685 = vmatpush.xpose.msra.mxu0 0.0
        %686 = vmatpush.xpose.msra.mxu0 0.0
        %687 = vmatpush.xpose.msra.mxu0 0.0
        %688 = vmatpush.xpose.msra.mxu0 0.0
        %689 = vmatpush.xpose.msra.mxu0 0.0
        %690 = vmatpush.xpose.msra.mxu0 0.0
        %691 = vmatpush.xpose.msra.mxu0 0.0
        %692 = vmatpush.xpose.msra.mxu0 0.0
        %693 = vmatpush.xpose.msra.mxu0 0.0
        %694 = vmatpush.xpose.msra.mxu0 0.0
        %695 = vmatpush.xpose.msra.mxu0 0.0
        %696 = vmatpush.xpose.msra.mxu0 0.0
        %697 = vmatpush.xpose.msra.mxu0 0.0
        %698 = vmatpush.xpose.msra.mxu0 0.0
        %699 = vmatpush.xpose.msra.mxu0 %v682
        %700 = vmatmul.f32.gmra.mxu0 %v679
        %v701 = vpop.f32.mrf.mxu0
        %v702 = vadd.f32 0.0, %v701
        %703 = vdwg.mxu0
        %v704 = vsel %vm351, %v702, -inf
        %705 = vmax.xlane.f32.xlu0 %v704
        %v706 = vpop.xlane.xlu0 %705
        %v707 = vsub.f32 %v702, %v706
        %v708 = vmul.f32 %v707, 1.442695
        %v709 = vpow.pop %v708
        %v710 = vsel %vm351, %v709, 0.0
        %711 = vadd.xlane.f32.xlu0 %v710
        %v712 = vpop.xlane.xlu0 %711
        %v713 = vrcp.pop %v712
        %v714 = vmul.f32 %v712, %v713
        %v715 = vsub.f32 1.0, %v714
        %v716 = vmul.f32 %v713, %v715
        %v717 = vadd.f32 %v713, %v716
        %vm718 = vweird.f32 %v712
        %vm719 = vweird.f32 %v713
        %vm720 = vmor %vm718, %vm719
        %v721 = vsel %vm720, %v713, %v717
        %v722 = vand.u32 2147483647, %v712
        %vm723 = vcmp.eq.f32.partialorder %v722, 8.507059e+37
        %v724 = vand.u32 %v712, 2147483648
        %v725 = vor.u32 1.1754944e-38, %v724
        %v726 = vsel %vm723, %v725, %v721
        %v727 = vmul.f32 %v709, %v726
        %v729 = vsel %vm351, %v727, 0
        %731 = vmatpush.msra.mxu0 0.0
        %732 = vmatpush.msra.mxu0 0.0
        %733 = vmatpush.msra.mxu0 0.0
        %734 = vmatpush.msra.mxu0 0.0
        %735 = vmatpush.msra.mxu0 0.0
        %736 = vmatpush.msra.mxu0 0.0
        %737 = vmatpush.msra.mxu0 0.0
        %738 = vmatpush.msra.mxu0 0.0
        %739 = vmatpush.msra.mxu0 0.0
        %740 = vmatpush.msra.mxu0 0.0
        %741 = vmatpush.msra.mxu0 0.0
        %742 = vmatpush.msra.mxu0 0.0
        %743 = vmatpush.msra.mxu0 0.0
        %744 = vmatpush.msra.mxu0 0.0
        %745 = vmatpush.msra.mxu0 0.0
        %746 = vmatpush.msra.mxu0 %v676
        %747 = vmatmul.f32.gmra.mxu0 %v729
        %v748 = vpop.f32.mrf.mxu0
        %v749 = vadd.f32 0.0, %v748
        %750 = vdwg.mxu0
        %s751 = scalar_lea.vmem %s4, 8
        %v752 = vld [vmem:[%s751] sm:$0xf]
        %v754 = vsel %vm324, %v749, 0
        %v757 = vsel %vm553, %v752, 0
        %759 = vmatpush.msra.mxu0 0.0
        %760 = vmatpush.msra.mxu0 0.0
        %761 = vmatpush.msra.mxu0 0.0
        %762 = vmatpush.msra.mxu0 0.0
        %763 = vmatpush.msra.mxu0 0.0
        %764 = vmatpush.msra.mxu0 0.0
        %765 = vmatpush.msra.mxu0 0.0
        %766 = vmatpush.msra.mxu0 0.0
        %767 = vmatpush.msra.mxu0 0.0
        %768 = vmatpush.msra.mxu0 0.0
        %769 = vmatpush.msra.mxu0 0.0
        %770 = vmatpush.msra.mxu0 0.0
        %771 = vmatpush.msra.mxu0 0.0
        %772 = vmatpush.msra.mxu0 0.0
        %773 = vmatpush.msra.mxu0 0.0
        %774 = vmatpush.msra.mxu0 %v757
        %775 = vmatmul.f32.gmra.mxu0 %v754
        %v776 = vpop.f32.mrf.mxu0
        %v777 = vadd.f32 0.0, %v776
        %778 = vdwg.mxu0
        %v779 = vadd.f32 %v601, %v777
        %s780 = scalar_lea.vmem %s1, 96
        %v781 = vld [vmem:[%s780] sm:$0xff]
        %v782 = vld [vmem:[%s780 + $0x8] sm:$0xff]
        %v783 = vld [vmem:[%s780 + $0x10] sm:$0xff]
        %v784 = vld [vmem:[%s780 + $0x18] sm:$0xff]
        %785 = vmatpush.msra.mxu0 0.0
        %786 = vmatpush.msra.mxu0 0.0
        %787 = vmatpush.msra.mxu0 0.0
        %788 = vmatpush.msra.mxu0 0.0
        %789 = vmatpush.msra.mxu0 0.0
        %790 = vmatpush.msra.mxu0 0.0
        %791 = vmatpush.msra.mxu0 0.0
        %792 = vmatpush.msra.mxu0 0.0
        %793 = vmatpush.msra.mxu0 0.0
        %794 = vmatpush.msra.mxu0 0.0
        %795 = vmatpush.msra.mxu0 0.0
        %796 = vmatpush.msra.mxu0 0.0
        %797 = vmatpush.msra.mxu0 %v784
        %798 = vmatpush.msra.mxu0 %v783
        %799 = vmatpush.msra.mxu0 %v782
        %800 = vmatpush.msra.mxu0 %v781
        %801 = vmatmul.f32.gmra.mxu0 %v254
        %v802 = vpop.f32.mrf.mxu0
        %v803 = vadd.f32 0.0, %v802
        %804 = vdwg.mxu0
        %s805 = scalar_lea.vmem %s2, 96
        %v806 = vld [vmem:[%s805] sm:$0xff]
        %v807 = vld [vmem:[%s805 + $0x8] sm:$0xff]
        %v808 = vld [vmem:[%s805 + $0x10] sm:$0xff]
        %v809 = vld [vmem:[%s805 + $0x18] sm:$0xff]
        %810 = vmatpush.msra.mxu0 0.0
        %811 = vmatpush.msra.mxu0 0.0
        %812 = vmatpush.msra.mxu0 0.0
        %813 = vmatpush.msra.mxu0 0.0
        %814 = vmatpush.msra.mxu0 0.0
        %815 = vmatpush.msra.mxu0 0.0
        %816 = vmatpush.msra.mxu0 0.0
        %817 = vmatpush.msra.mxu0 0.0
        %818 = vmatpush.msra.mxu0 0.0
        %819 = vmatpush.msra.mxu0 0.0
        %820 = vmatpush.msra.mxu0 0.0
        %821 = vmatpush.msra.mxu0 0.0
        %822 = vmatpush.msra.mxu0 %v809
        %823 = vmatpush.msra.mxu0 %v808
        %824 = vmatpush.msra.mxu0 %v807
        %825 = vmatpush.msra.mxu0 %v806
        %826 = vmatmul.f32.gmra.mxu0 %v254
        %v827 = vpop.f32.mrf.mxu0
        %v828 = vadd.f32 0.0, %v827
        %829 = vdwg.mxu0
        %s830 = scalar_lea.vmem %s3, 96
        %v831 = vld [vmem:[%s830] sm:$0xff]
        %v832 = vld [vmem:[%s830 + $0x8] sm:$0xff]
        %v833 = vld [vmem:[%s830 + $0x10] sm:$0xff]
        %v834 = vld [vmem:[%s830 + $0x18] sm:$0xff]
        %835 = vmatpush.msra.mxu0 0.0
        %836 = vmatpush.msra.mxu0 0.0
        %837 = vmatpush.msra.mxu0 0.0
        %838 = vmatpush.msra.mxu0 0.0
        %839 = vmatpush.msra.mxu0 0.0
        %840 = vmatpush.msra.mxu0 0.0
        %841 = vmatpush.msra.mxu0 0.0
        %842 = vmatpush.msra.mxu0 0.0
        %843 = vmatpush.msra.mxu0 0.0
        %844 = vmatpush.msra.mxu0 0.0
        %845 = vmatpush.msra.mxu0 0.0
        %846 = vmatpush.msra.mxu0 0.0
        %847 = vmatpush.msra.mxu0 %v834
        %848 = vmatpush.msra.mxu0 %v833
        %849 = vmatpush.msra.mxu0 %v832
        %850 = vmatpush.msra.mxu0 %v831
        %851 = vmatmul.f32.gmra.mxu0 %v254
        %v852 = vpop.f32.mrf.mxu0
        %v853 = vadd.f32 0.0, %v852
        %854 = vdwg.mxu0
        %v856 = vsel %vm324, %v803, 0
        %v859 = vsel %vm324, %v828, 0
        %861 = vmatpush.xpose.msra.mxu0 0.0
        %862 = vmatpush.xpose.msra.mxu0 0.0
        %863 = vmatpush.xpose.msra.mxu0 0.0
        %864 = vmatpush.xpose.msra.mxu0 0.0
        %865 = vmatpush.xpose.msra.mxu0 0.0
        %866 = vmatpush.xpose.msra.mxu0 0.0
        %867 = vmatpush.xpose.msra.mxu0 0.0
        %868 = vmatpush.xpose.msra.mxu0 0.0
        %869 = vmatpush.xpose.msra.mxu0 0.0
        %870 = vmatpush.xpose.msra.mxu0 0.0
        %871 = vmatpush.xpose.msra.mxu0 0.0
        %872 = vmatpush.xpose.msra.mxu0 0.0
        %873 = vmatpush.xpose.msra.mxu0 0.0
        %874 = vmatpush.xpose.msra.mxu0 0.0
        %875 = vmatpush.xpose.msra.mxu0 0.0
        %876 = vmatpush.xpose.msra.mxu0 %v859
        %877 = vmatmul.f32.gmra.mxu0 %v856
        %v878 = vpop.f32.mrf.mxu0
        %v879 = vadd.f32 0.0, %v878
        %880 = vdwg.mxu0
        %v881 = vsel %vm351, %v879, -inf
        %882 = vmax.xlane.f32.xlu0 %v881
        %v883 = vpop.xlane.xlu0 %882
        %v884 = vsub.f32 %v879, %v883
        %v885 = vmul.f32 %v884, 1.442695
        %v886 = vpow.pop %v885
        %v887 = vsel %vm351, %v886, 0.0
        %888 = vadd.xlane.f32.xlu0 %v887
        %v889 = vpop.xlane.xlu0 %888
        %v890 = vrcp.pop %v889
        %v891 = vmul.f32 %v889, %v890
        %v892 = vsub.f32 1.0, %v891
        %v893 = vmul.f32 %v890, %v892
        %v894 = vadd.f32 %v890, %v893
        %vm895 = vweird.f32 %v889
        %vm896 = vweird.f32 %v890
        %vm897 = vmor %vm895, %vm896
        %v898 = vsel %vm897, %v890, %v894
        %v899 = vand.u32 2147483647, %v889
        %vm900 = vcmp.eq.f32.partialorder %v899, 8.507059e+37
        %v901 = vand.u32 %v889, 2147483648
        %v902 = vor.u32 1.1754944e-38, %v901
        %v903 = vsel %vm900, %v902, %v898
        %v904 = vmul.f32 %v886, %v903
        %v906 = vsel %vm351, %v904, 0
        %908 = vmatpush.msra.mxu0 0.0
        %909 = vmatpush.msra.mxu0 0.0
        %910 = vmatpush.msra.mxu0 0.0
        %911 = vmatpush.msra.mxu0 0.0
        %912 = vmatpush.msra.mxu0 0.0
        %913 = vmatpush.msra.mxu0 0.0
        %914 = vmatpush.msra.mxu0 0.0
        %915 = vmatpush.msra.mxu0 0.0
        %916 = vmatpush.msra.mxu0 0.0
        %917 = vmatpush.msra.mxu0 0.0
        %918 = vmatpush.msra.mxu0 0.0
        %919 = vmatpush.msra.mxu0 0.0
        %920 = vmatpush.msra.mxu0 0.0
        %921 = vmatpush.msra.mxu0 0.0
        %922 = vmatpush.msra.mxu0 0.0
        %923 = vmatpush.msra.mxu0 %v853
        %924 = vmatmul.f32.gmra.mxu0 %v906
        %v925 = vpop.f32.mrf.mxu0
        %v926 = vadd.f32 0.0, %v925
        %927 = vdwg.mxu0
        %s928 = scalar_lea.vmem %s4, 12
        %v929 = vld [vmem:[%s928] sm:$0xf]
        %v931 = vsel %vm324, %v926, 0
        %v934 = vsel %vm553, %v929, 0
        %936 = vmatpush.msra.mxu0 0.0
        %937 = vmatpush.msra.mxu0 0.0
        %938 = vmatpush.msra.mxu0 0.0
        %939 = vmatpush.msra.mxu0 0.0
        %940 = vmatpush.msra.mxu0 0.0
        %941 = vmatpush.msra.mxu0 0.0
        %942 = vmatpush.msra.mxu0 0.0
        %943 = vmatpush.msra.mxu0 0.0
        %944 = vmatpush.msra.mxu0 0.0
        %945 = vmatpush.msra.mxu0 0.0
        %946 = vmatpush.msra.mxu0 0.0
        %947 = vmatpush.msra.mxu0 0.0
        %948 = vmatpush.msra.mxu0 0.0
        %949 = vmatpush.msra.mxu0 0.0
        %950 = vmatpush.msra.mxu0 0.0
        %951 = vmatpush.msra.mxu0 %v934
        %952 = vmatmul.f32.gmra.mxu0 %v931
        %v953 = vpop.f32.mrf.mxu0
        %v954 = vadd.f32 0.0, %v953
        %955 = vdwg.mxu0
        %v956 = vadd.f32 %v779, %v954
        %s957 = scalar_lea.vmem %s1, 128
        %v958 = vld [vmem:[%s957] sm:$0xff]
        %v959 = vld [vmem:[%s957 + $0x8] sm:$0xff]
        %v960 = vld [vmem:[%s957 + $0x10] sm:$0xff]
        %v961 = vld [vmem:[%s957 + $0x18] sm:$0xff]
        %962 = vmatpush.msra.mxu0 0.0
        %963 = vmatpush.msra.mxu0 0.0
        %964 = vmatpush.msra.mxu0 0.0
        %965 = vmatpush.msra.mxu0 0.0
        %966 = vmatpush.msra.mxu0 0.0
        %967 = vmatpush.msra.mxu0 0.0
        %968 = vmatpush.msra.mxu0 0.0
        %969 = vmatpush.msra.mxu0 0.0
        %970 = vmatpush.msra.mxu0 0.0
        %971 = vmatpush.msra.mxu0 0.0
        %972 = vmatpush.msra.mxu0 0.0
        %973 = vmatpush.msra.mxu0 0.0
        %974 = vmatpush.msra.mxu0 %v961
        %975 = vmatpush.msra.mxu0 %v960
        %976 = vmatpush.msra.mxu0 %v959
        %977 = vmatpush.msra.mxu0 %v958
        %978 = vmatmul.f32.gmra.mxu0 %v254
        %v979 = vpop.f32.mrf.mxu0
        %v980 = vadd.f32 0.0, %v979
        %981 = vdwg.mxu0
        %s982 = scalar_lea.vmem %s2, 128
        %v983 = vld [vmem:[%s982] sm:$0xff]
        %v984 = vld [vmem:[%s982 + $0x8] sm:$0xff]
        %v985 = vld [vmem:[%s982 + $0x10] sm:$0xff]
        %v986 = vld [vmem:[%s982 + $0x18] sm:$0xff]
        %987 = vmatpush.msra.mxu0 0.0
        %988 = vmatpush.msra.mxu0 0.0
        %989 = vmatpush.msra.mxu0 0.0
        %990 = vmatpush.msra.mxu0 0.0
        %991 = vmatpush.msra.mxu0 0.0
        %992 = vmatpush.msra.mxu0 0.0
        %993 = vmatpush.msra.mxu0 0.0
        %994 = vmatpush.msra.mxu0 0.0
        %995 = vmatpush.msra.mxu0 0.0
        %996 = vmatpush.msra.mxu0 0.0
        %997 = vmatpush.msra.mxu0 0.0
        %998 = vmatpush.msra.mxu0 0.0
        %999 = vmatpush.msra.mxu0 %v986
        %1000 = vmatpush.msra.mxu0 %v985
        %1001 = vmatpush.msra.mxu0 %v984
        %1002 = vmatpush.msra.mxu0 %v983
        %1003 = vmatmul.f32.gmra.mxu0 %v254
        %v1004 = vpop.f32.mrf.mxu0
        %v1005 = vadd.f32 0.0, %v1004
        %1006 = vdwg.mxu0
        %s1007 = scalar_lea.vmem %s3, 128
        %v1008 = vld [vmem:[%s1007] sm:$0xff]
        %v1009 = vld [vmem:[%s1007 + $0x8] sm:$0xff]
        %v1010 = vld [vmem:[%s1007 + $0x10] sm:$0xff]
        %v1011 = vld [vmem:[%s1007 + $0x18] sm:$0xff]
        %1012 = vmatpush.msra.mxu0 0.0
        %1013 = vmatpush.msra.mxu0 0.0
        %1014 = vmatpush.msra.mxu0 0.0
        %1015 = vmatpush.msra.mxu0 0.0
        %1016 = vmatpush.msra.mxu0 0.0
        %1017 = vmatpush.msra.mxu0 0.0
        %1018 = vmatpush.msra.mxu0 0.0
        %1019 = vmatpush.msra.mxu0 0.0
        %1020 = vmatpush.msra.mxu0 0.0
        %1021 = vmatpush.msra.mxu0 0.0
        %1022 = vmatpush.msra.mxu0 0.0
        %1023 = vmatpush.msra.mxu0 0.0
        %1024 = vmatpush.msra.mxu0 %v1011
        %1025 = vmatpush.msra.mxu0 %v1010
        %1026 = vmatpush.msra.mxu0 %v1009
        %1027 = vmatpush.msra.mxu0 %v1008
        %1028 = vmatmul.f32.gmra.mxu0 %v254
        %v1029 = vpop.f32.mrf.mxu0
        %v1030 = vadd.f32 0.0, %v1029
        %1031 = vdwg.mxu0
        %v1033 = vsel %vm324, %v980, 0
        %v1036 = vsel %vm324, %v1005, 0
        %1038 = vmatpush.xpose.msra.mxu0 0.0
        %1039 = vmatpush.xpose.msra.mxu0 0.0
        %1040 = vmatpush.xpose.msra.mxu0 0.0
        %1041 = vmatpush.xpose.msra.mxu0 0.0
        %1042 = vmatpush.xpose.msra.mxu0 0.0
        %1043 = vmatpush.xpose.msra.mxu0 0.0
        %1044 = vmatpush.xpose.msra.mxu0 0.0
        %1045 = vmatpush.xpose.msra.mxu0 0.0
        %1046 = vmatpush.xpose.msra.mxu0 0.0
        %1047 = vmatpush.xpose.msra.mxu0 0.0
        %1048 = vmatpush.xpose.msra.mxu0 0.0
        %1049 = vmatpush.xpose.msra.mxu0 0.0
        %1050 = vmatpush.xpose.msra.mxu0 0.0
        %1051 = vmatpush.xpose.msra.mxu0 0.0
        %1052 = vmatpush.xpose.msra.mxu0 0.0
        %1053 = vmatpush.xpose.msra.mxu0 %v1036
        %1054 = vmatmul.f32.gmra.mxu0 %v1033
        %v1055 = vpop.f32.mrf.mxu0
        %v1056 = vadd.f32 0.0, %v1055
        %1057 = vdwg.mxu0
        %v1058 = vsel %vm351, %v1056, -inf
        %1059 = vmax.xlane.f32.xlu0 %v1058
        %v1060 = vpop.xlane.xlu0 %1059
        %v1061 = vsub.f32 %v1056, %v1060
        %v1062 = vmul.f32 %v1061, 1.442695
        %v1063 = vpow.pop %v1062
        %v1064 = vsel %vm351, %v1063, 0.0
        %1065 = vadd.xlane.f32.xlu0 %v1064
        %v1066 = vpop.xlane.xlu0 %1065
        %v1067 = vrcp.pop %v1066
        %v1068 = vmul.f32 %v1066, %v1067
        %v1069 = vsub.f32 1.0, %v1068
        %v1070 = vmul.f32 %v1067, %v1069
        %v1071 = vadd.f32 %v1067, %v1070
        %vm1072 = vweird.f32 %v1066
        %vm1073 = vweird.f32 %v1067
        %vm1074 = vmor %vm1072, %vm1073
        %v1075 = vsel %vm1074, %v1067, %v1071
        %v1076 = vand.u32 2147483647, %v1066
        %vm1077 = vcmp.eq.f32.partialorder %v1076, 8.507059e+37
        %v1078 = vand.u32 %v1066, 2147483648
        %v1079 = vor.u32 1.1754944e-38, %v1078
        %v1080 = vsel %vm1077, %v1079, %v1075
        %v1081 = vmul.f32 %v1063, %v1080
        %v1083 = vsel %vm351, %v1081, 0
        %1085 = vmatpush.msra.mxu0 0.0
        %1086 = vmatpush.msra.mxu0 0.0
        %1087 = vmatpush.msra.mxu0 0.0
        %1088 = vmatpush.msra.mxu0 0.0
        %1089 = vmatpush.msra.mxu0 0.0
        %1090 = vmatpush.msra.mxu0 0.0
        %1091 = vmatpush.msra.mxu0 0.0
        %1092 = vmatpush.msra.mxu0 0.0
        %1093 = vmatpush.msra.mxu0 0.0
        %1094 = vmatpush.msra.mxu0 0.0
        %1095 = vmatpush.msra.mxu0 0.0
        %1096 = vmatpush.msra.mxu0 0.0
        %1097 = vmatpush.msra.mxu0 0.0
        %1098 = vmatpush.msra.mxu0 0.0
        %1099 = vmatpush.msra.mxu0 0.0
        %1100 = vmatpush.msra.mxu0 %v1030
        %1101 = vmatmul.f32.gmra.mxu0 %v1083
        %v1102 = vpop.f32.mrf.mxu0
        %v1103 = vadd.f32 0.0, %v1102
        %1104 = vdwg.mxu0
        %s1105 = scalar_lea.vmem %s4, 16
        %v1106 = vld [vmem:[%s1105] sm:$0xf]
        %v1108 = vsel %vm324, %v1103, 0
        %v1111 = vsel %vm553, %v1106, 0
        %1113 = vmatpush.msra.mxu0 0.0
        %1114 = vmatpush.msra.mxu0 0.0
        %1115 = vmatpush.msra.mxu0 0.0
        %1116 = vmatpush.msra.mxu0 0.0
        %1117 = vmatpush.msra.mxu0 0.0
        %1118 = vmatpush.msra.mxu0 0.0
        %1119 = vmatpush.msra.mxu0 0.0
        %1120 = vmatpush.msra.mxu0 0.0
        %1121 = vmatpush.msra.mxu0 0.0
        %1122 = vmatpush.msra.mxu0 0.0
        %1123 = vmatpush.msra.mxu0 0.0
        %1124 = vmatpush.msra.mxu0 0.0
        %1125 = vmatpush.msra.mxu0 0.0
        %1126 = vmatpush.msra.mxu0 0.0
        %1127 = vmatpush.msra.mxu0 0.0
        %1128 = vmatpush.msra.mxu0 %v1111
        %1129 = vmatmul.f32.gmra.mxu0 %v1108
        %v1130 = vpop.f32.mrf.mxu0
        %v1131 = vadd.f32 0.0, %v1130
        %1132 = vdwg.mxu0
        %v1133 = vadd.f32 %v956, %v1131
        %s1134 = scalar_lea.vmem %s1, 160
        %v1135 = vld [vmem:[%s1134] sm:$0xff]
        %v1136 = vld [vmem:[%s1134 + $0x8] sm:$0xff]
        %v1137 = vld [vmem:[%s1134 + $0x10] sm:$0xff]
        %v1138 = vld [vmem:[%s1134 + $0x18] sm:$0xff]
        %1139 = vmatpush.msra.mxu0 0.0
        %1140 = vmatpush.msra.mxu0 0.0
        %1141 = vmatpush.msra.mxu0 0.0
        %1142 = vmatpush.msra.mxu0 0.0
        %1143 = vmatpush.msra.mxu0 0.0
        %1144 = vmatpush.msra.mxu0 0.0
        %1145 = vmatpush.msra.mxu0 0.0
        %1146 = vmatpush.msra.mxu0 0.0
        %1147 = vmatpush.msra.mxu0 0.0
        %1148 = vmatpush.msra.mxu0 0.0
        %1149 = vmatpush.msra.mxu0 0.0
        %1150 = vmatpush.msra.mxu0 0.0
        %1151 = vmatpush.msra.mxu0 %v1138
        %1152 = vmatpush.msra.mxu0 %v1137
        %1153 = vmatpush.msra.mxu0 %v1136
        %1154 = vmatpush.msra.mxu0 %v1135
        %1155 = vmatmul.f32.gmra.mxu0 %v254
        %v1156 = vpop.f32.mrf.mxu0
        %v1157 = vadd.f32 0.0, %v1156
        %1158 = vdwg.mxu0
        %s1159 = scalar_lea.vmem %s2, 160
        %v1160 = vld [vmem:[%s1159] sm:$0xff]
        %v1161 = vld [vmem:[%s1159 + $0x8] sm:$0xff]
        %v1162 = vld [vmem:[%s1159 + $0x10] sm:$0xff]
        %v1163 = vld [vmem:[%s1159 + $0x18] sm:$0xff]
        %1164 = vmatpush.msra.mxu0 0.0
        %1165 = vmatpush.msra.mxu0 0.0
        %1166 = vmatpush.msra.mxu0 0.0
        %1167 = vmatpush.msra.mxu0 0.0
        %1168 = vmatpush.msra.mxu0 0.0
        %1169 = vmatpush.msra.mxu0 0.0
        %1170 = vmatpush.msra.mxu0 0.0
        %1171 = vmatpush.msra.mxu0 0.0
        %1172 = vmatpush.msra.mxu0 0.0
        %1173 = vmatpush.msra.mxu0 0.0
        %1174 = vmatpush.msra.mxu0 0.0
        %1175 = vmatpush.msra.mxu0 0.0
        %1176 = vmatpush.msra.mxu0 %v1163
        %1177 = vmatpush.msra.mxu0 %v1162
        %1178 = vmatpush.msra.mxu0 %v1161
        %1179 = vmatpush.msra.mxu0 %v1160
        %1180 = vmatmul.f32.gmra.mxu0 %v254
        %v1181 = vpop.f32.mrf.mxu0
        %v1182 = vadd.f32 0.0, %v1181
        %1183 = vdwg.mxu0
        %s1184 = scalar_lea.vmem %s3, 160
        %v1185 = vld [vmem:[%s1184] sm:$0xff]
        %v1186 = vld [vmem:[%s1184 + $0x8] sm:$0xff]
        %v1187 = vld [vmem:[%s1184 + $0x10] sm:$0xff]
        %v1188 = vld [vmem:[%s1184 + $0x18] sm:$0xff]
        %1189 = vmatpush.msra.mxu0 0.0
        %1190 = vmatpush.msra.mxu0 0.0
        %1191 = vmatpush.msra.mxu0 0.0
        %1192 = vmatpush.msra.mxu0 0.0
        %1193 = vmatpush.msra.mxu0 0.0
        %1194 = vmatpush.msra.mxu0 0.0
        %1195 = vmatpush.msra.mxu0 0.0
        %1196 = vmatpush.msra.mxu0 0.0
        %1197 = vmatpush.msra.mxu0 0.0
        %1198 = vmatpush.msra.mxu0 0.0
        %1199 = vmatpush.msra.mxu0 0.0
        %1200 = vmatpush.msra.mxu0 0.0
        %1201 = vmatpush.msra.mxu0 %v1188
        %1202 = vmatpush.msra.mxu0 %v1187
        %1203 = vmatpush.msra.mxu0 %v1186
        %1204 = vmatpush.msra.mxu0 %v1185
        %1205 = vmatmul.f32.gmra.mxu0 %v254
        %v1206 = vpop.f32.mrf.mxu0
        %v1207 = vadd.f32 0.0, %v1206
        %1208 = vdwg.mxu0
        %v1210 = vsel %vm324, %v1157, 0
        %v1213 = vsel %vm324, %v1182, 0
        %1215 = vmatpush.xpose.msra.mxu0 0.0
        %1216 = vmatpush.xpose.msra.mxu0 0.0
        %1217 = vmatpush.xpose.msra.mxu0 0.0
        %1218 = vmatpush.xpose.msra.mxu0 0.0
        %1219 = vmatpush.xpose.msra.mxu0 0.0
        %1220 = vmatpush.xpose.msra.mxu0 0.0
        %1221 = vmatpush.xpose.msra.mxu0 0.0
        %1222 = vmatpush.xpose.msra.mxu0 0.0
        %1223 = vmatpush.xpose.msra.mxu0 0.0
        %1224 = vmatpush.xpose.msra.mxu0 0.0
        %1225 = vmatpush.xpose.msra.mxu0 0.0
        %1226 = vmatpush.xpose.msra.mxu0 0.0
        %1227 = vmatpush.xpose.msra.mxu0 0.0
        %1228 = vmatpush.xpose.msra.mxu0 0.0
        %1229 = vmatpush.xpose.msra.mxu0 0.0
        %1230 = vmatpush.xpose.msra.mxu0 %v1213
        %1231 = vmatmul.f32.gmra.mxu0 %v1210
        %v1232 = vpop.f32.mrf.mxu0
        %v1233 = vadd.f32 0.0, %v1232
        %1234 = vdwg.mxu0
        %v1235 = vsel %vm351, %v1233, -inf
        %1236 = vmax.xlane.f32.xlu0 %v1235
        %v1237 = vpop.xlane.xlu0 %1236
        %v1238 = vsub.f32 %v1233, %v1237
        %v1239 = vmul.f32 %v1238, 1.442695
        %v1240 = vpow.pop %v1239
        %v1241 = vsel %vm351, %v1240, 0.0
        %1242 = vadd.xlane.f32.xlu0 %v1241
        %v1243 = vpop.xlane.xlu0 %1242
        %v1244 = vrcp.pop %v1243
        %v1245 = vmul.f32 %v1243, %v1244
        %v1246 = vsub.f32 1.0, %v1245
        %v1247 = vmul.f32 %v1244, %v1246
        %v1248 = vadd.f32 %v1244, %v1247
        %vm1249 = vweird.f32 %v1243
        %vm1250 = vweird.f32 %v1244
        %vm1251 = vmor %vm1249, %vm1250
        %v1252 = vsel %vm1251, %v1244, %v1248
        %v1253 = vand.u32 2147483647, %v1243
        %vm1254 = vcmp.eq.f32.partialorder %v1253, 8.507059e+37
        %v1255 = vand.u32 %v1243, 2147483648
        %v1256 = vor.u32 1.1754944e-38, %v1255
        %v1257 = vsel %vm1254, %v1256, %v1252
        %v1258 = vmul.f32 %v1240, %v1257
        %v1260 = vsel %vm351, %v1258, 0
        %1262 = vmatpush.msra.mxu0 0.0
        %1263 = vmatpush.msra.mxu0 0.0
        %1264 = vmatpush.msra.mxu0 0.0
        %1265 = vmatpush.msra.mxu0 0.0
        %1266 = vmatpush.msra.mxu0 0.0
        %1267 = vmatpush.msra.mxu0 0.0
        %1268 = vmatpush.msra.mxu0 0.0
        %1269 = vmatpush.msra.mxu0 0.0
        %1270 = vmatpush.msra.mxu0 0.0
        %1271 = vmatpush.msra.mxu0 0.0
        %1272 = vmatpush.msra.mxu0 0.0
        %1273 = vmatpush.msra.mxu0 0.0
        %1274 = vmatpush.msra.mxu0 0.0
        %1275 = vmatpush.msra.mxu0 0.0
        %1276 = vmatpush.msra.mxu0 0.0
        %1277 = vmatpush.msra.mxu0 %v1207
        %1278 = vmatmul.f32.gmra.mxu0 %v1260
        %v1279 = vpop.f32.mrf.mxu0
        %v1280 = vadd.f32 0.0, %v1279
        %1281 = vdwg.mxu0
        %s1282 = scalar_lea.vmem %s4, 20
        %v1283 = vld [vmem:[%s1282] sm:$0xf]
        %v1285 = vsel %vm324, %v1280, 0
        %v1288 = vsel %vm553, %v1283, 0
        %1290 = vmatpush.msra.mxu0 0.0
        %1291 = vmatpush.msra.mxu0 0.0
        %1292 = vmatpush.msra.mxu0 0.0
        %1293 = vmatpush.msra.mxu0 0.0
        %1294 = vmatpush.msra.mxu0 0.0
        %1295 = vmatpush.msra.mxu0 0.0
        %1296 = vmatpush.msra.mxu0 0.0
        %1297 = vmatpush.msra.mxu0 0.0
        %1298 = vmatpush.msra.mxu0 0.0
        %1299 = vmatpush.msra.mxu0 0.0
        %1300 = vmatpush.msra.mxu0 0.0
        %1301 = vmatpush.msra.mxu0 0.0
        %1302 = vmatpush.msra.mxu0 0.0
        %1303 = vmatpush.msra.mxu0 0.0
        %1304 = vmatpush.msra.mxu0 0.0
        %1305 = vmatpush.msra.mxu0 %v1288
        %1306 = vmatmul.f32.gmra.mxu0 %v1285
        %v1307 = vpop.f32.mrf.mxu0
        %v1308 = vadd.f32 0.0, %v1307
        %1309 = vdwg.mxu0
        %v1310 = vadd.f32 %v1133, %v1308
        %s1311 = scalar_lea.vmem %s1, 192
        %v1312 = vld [vmem:[%s1311] sm:$0xff]
        %v1313 = vld [vmem:[%s1311 + $0x8] sm:$0xff]
        %v1314 = vld [vmem:[%s1311 + $0x10] sm:$0xff]
        %v1315 = vld [vmem:[%s1311 + $0x18] sm:$0xff]
        %1316 = vmatpush.msra.mxu0 0.0
        %1317 = vmatpush.msra.mxu0 0.0
        %1318 = vmatpush.msra.mxu0 0.0
        %1319 = vmatpush.msra.mxu0 0.0
        %1320 = vmatpush.msra.mxu0 0.0
        %1321 = vmatpush.msra.mxu0 0.0
        %1322 = vmatpush.msra.mxu0 0.0
        %1323 = vmatpush.msra.mxu0 0.0
        %1324 = vmatpush.msra.mxu0 0.0
        %1325 = vmatpush.msra.mxu0 0.0
        %1326 = vmatpush.msra.mxu0 0.0
        %1327 = vmatpush.msra.mxu0 0.0
        %1328 = vmatpush.msra.mxu0 %v1315
        %1329 = vmatpush.msra.mxu0 %v1314
        %1330 = vmatpush.msra.mxu0 %v1313
        %1331 = vmatpush.msra.mxu0 %v1312
        %1332 = vmatmul.f32.gmra.mxu0 %v254
        %v1333 = vpop.f32.mrf.mxu0
        %v1334 = vadd.f32 0.0, %v1333
        %1335 = vdwg.mxu0
        %s1336 = scalar_lea.vmem %s2, 192
        %v1337 = vld [vmem:[%s1336] sm:$0xff]
        %v1338 = vld [vmem:[%s1336 + $0x8] sm:$0xff]
        %v1339 = vld [vmem:[%s1336 + $0x10] sm:$0xff]
        %v1340 = vld [vmem:[%s1336 + $0x18] sm:$0xff]
        %1341 = vmatpush.msra.mxu0 0.0
        %1342 = vmatpush.msra.mxu0 0.0
        %1343 = vmatpush.msra.mxu0 0.0
        %1344 = vmatpush.msra.mxu0 0.0
        %1345 = vmatpush.msra.mxu0 0.0
        %1346 = vmatpush.msra.mxu0 0.0
        %1347 = vmatpush.msra.mxu0 0.0
        %1348 = vmatpush.msra.mxu0 0.0
        %1349 = vmatpush.msra.mxu0 0.0
        %1350 = vmatpush.msra.mxu0 0.0
        %1351 = vmatpush.msra.mxu0 0.0
        %1352 = vmatpush.msra.mxu0 0.0
        %1353 = vmatpush.msra.mxu0 %v1340
        %1354 = vmatpush.msra.mxu0 %v1339
        %1355 = vmatpush.msra.mxu0 %v1338
        %1356 = vmatpush.msra.mxu0 %v1337
        %1357 = vmatmul.f32.gmra.mxu0 %v254
        %v1358 = vpop.f32.mrf.mxu0
        %v1359 = vadd.f32 0.0, %v1358
        %1360 = vdwg.mxu0
        %s1361 = scalar_lea.vmem %s3, 192
        %v1362 = vld [vmem:[%s1361] sm:$0xff]
        %v1363 = vld [vmem:[%s1361 + $0x8] sm:$0xff]
        %v1364 = vld [vmem:[%s1361 + $0x10] sm:$0xff]
        %v1365 = vld [vmem:[%s1361 + $0x18] sm:$0xff]
        %1366 = vmatpush.msra.mxu0 0.0
        %1367 = vmatpush.msra.mxu0 0.0
        %1368 = vmatpush.msra.mxu0 0.0
        %1369 = vmatpush.msra.mxu0 0.0
        %1370 = vmatpush.msra.mxu0 0.0
        %1371 = vmatpush.msra.mxu0 0.0
        %1372 = vmatpush.msra.mxu0 0.0
        %1373 = vmatpush.msra.mxu0 0.0
        %1374 = vmatpush.msra.mxu0 0.0
        %1375 = vmatpush.msra.mxu0 0.0
        %1376 = vmatpush.msra.mxu0 0.0
        %1377 = vmatpush.msra.mxu0 0.0
        %1378 = vmatpush.msra.mxu0 %v1365
        %1379 = vmatpush.msra.mxu0 %v1364
        %1380 = vmatpush.msra.mxu0 %v1363
        %1381 = vmatpush.msra.mxu0 %v1362
        %1382 = vmatmul.f32.gmra.mxu0 %v254
        %v1383 = vpop.f32.mrf.mxu0
        %v1384 = vadd.f32 0.0, %v1383
        %1385 = vdwg.mxu0
        %v1387 = vsel %vm324, %v1334, 0
        %v1390 = vsel %vm324, %v1359, 0
        %1392 = vmatpush.xpose.msra.mxu0 0.0
        %1393 = vmatpush.xpose.msra.mxu0 0.0
        %1394 = vmatpush.xpose.msra.mxu0 0.0
        %1395 = vmatpush.xpose.msra.mxu0 0.0
        %1396 = vmatpush.xpose.msra.mxu0 0.0
        %1397 = vmatpush.xpose.msra.mxu0 0.0
        %1398 = vmatpush.xpose.msra.mxu0 0.0
        %1399 = vmatpush.xpose.msra.mxu0 0.0
        %1400 = vmatpush.xpose.msra.mxu0 0.0
        %1401 = vmatpush.xpose.msra.mxu0 0.0
        %1402 = vmatpush.xpose.msra.mxu0 0.0
        %1403 = vmatpush.xpose.msra.mxu0 0.0
        %1404 = vmatpush.xpose.msra.mxu0 0.0
        %1405 = vmatpush.xpose.msra.mxu0 0.0
        %1406 = vmatpush.xpose.msra.mxu0 0.0
        %1407 = vmatpush.xpose.msra.mxu0 %v1390
        %1408 = vmatmul.f32.gmra.mxu0 %v1387
        %v1409 = vpop.f32.mrf.mxu0
        %v1410 = vadd.f32 0.0, %v1409
        %1411 = vdwg.mxu0
        %v1412 = vsel %vm351, %v1410, -inf
        %1413 = vmax.xlane.f32.xlu0 %v1412
        %v1414 = vpop.xlane.xlu0 %1413
        %v1415 = vsub.f32 %v1410, %v1414
        %v1416 = vmul.f32 %v1415, 1.442695
        %v1417 = vpow.pop %v1416
        %v1418 = vsel %vm351, %v1417, 0.0
        %1419 = vadd.xlane.f32.xlu0 %v1418
        %v1420 = vpop.xlane.xlu0 %1419
        %v1421 = vrcp.pop %v1420
        %v1422 = vmul.f32 %v1420, %v1421
        %v1423 = vsub.f32 1.0, %v1422
        %v1424 = vmul.f32 %v1421, %v1423
        %v1425 = vadd.f32 %v1421, %v1424
        %vm1426 = vweird.f32 %v1420
        %vm1427 = vweird.f32 %v1421
        %vm1428 = vmor %vm1426, %vm1427
        %v1429 = vsel %vm1428, %v1421, %v1425
        %v1430 = vand.u32 2147483647, %v1420
        %vm1431 = vcmp.eq.f32.partialorder %v1430, 8.507059e+37
        %v1432 = vand.u32 %v1420, 2147483648
        %v1433 = vor.u32 1.1754944e-38, %v1432
        %v1434 = vsel %vm1431, %v1433, %v1429
        %v1435 = vmul.f32 %v1417, %v1434
        %v1437 = vsel %vm351, %v1435, 0
        %1439 = vmatpush.msra.mxu0 0.0
        %1440 = vmatpush.msra.mxu0 0.0
        %1441 = vmatpush.msra.mxu0 0.0
        %1442 = vmatpush.msra.mxu0 0.0
        %1443 = vmatpush.msra.mxu0 0.0
        %1444 = vmatpush.msra.mxu0 0.0
        %1445 = vmatpush.msra.mxu0 0.0
        %1446 = vmatpush.msra.mxu0 0.0
        %1447 = vmatpush.msra.mxu0 0.0
        %1448 = vmatpush.msra.mxu0 0.0
        %1449 = vmatpush.msra.mxu0 0.0
        %1450 = vmatpush.msra.mxu0 0.0
        %1451 = vmatpush.msra.mxu0 0.0
        %1452 = vmatpush.msra.mxu0 0.0
        %1453 = vmatpush.msra.mxu0 0.0
        %1454 = vmatpush.msra.mxu0 %v1384
        %1455 = vmatmul.f32.gmra.mxu0 %v1437
        %v1456 = vpop.f32.mrf.mxu0
        %v1457 = vadd.f32 0.0, %v1456
        %1458 = vdwg.mxu0
        %s1459 = scalar_lea.vmem %s4, 24
        %v1460 = vld [vmem:[%s1459] sm:$0xf]
        %v1462 = vsel %vm324, %v1457, 0
        %v1465 = vsel %vm553, %v1460, 0
        %1467 = vmatpush.msra.mxu0 0.0
        %1468 = vmatpush.msra.mxu0 0.0
        %1469 = vmatpush.msra.mxu0 0.0
        %1470 = vmatpush.msra.mxu0 0.0
        %1471 = vmatpush.msra.mxu0 0.0
        %1472 = vmatpush.msra.mxu0 0.0
        %1473 = vmatpush.msra.mxu0 0.0
        %1474 = vmatpush.msra.mxu0 0.0
        %1475 = vmatpush.msra.mxu0 0.0
        %1476 = vmatpush.msra.mxu0 0.0
        %1477 = vmatpush.msra.mxu0 0.0
        %1478 = vmatpush.msra.mxu0 0.0
        %1479 = vmatpush.msra.mxu0 0.0
        %1480 = vmatpush.msra.mxu0 0.0
        %1481 = vmatpush.msra.mxu0 0.0
        %1482 = vmatpush.msra.mxu0 %v1465
        %1483 = vmatmul.f32.gmra.mxu0 %v1462
        %v1484 = vpop.f32.mrf.mxu0
        %v1485 = vadd.f32 0.0, %v1484
        %1486 = vdwg.mxu0
        %v1487 = vadd.f32 %v1310, %v1485
        %s1488 = scalar_lea.vmem %s1, 224
        %v1489 = vld [vmem:[%s1488] sm:$0xff]
        %v1490 = vld [vmem:[%s1488 + $0x8] sm:$0xff]
        %v1491 = vld [vmem:[%s1488 + $0x10] sm:$0xff]
        %v1492 = vld [vmem:[%s1488 + $0x18] sm:$0xff]
        %1493 = vmatpush.msra.mxu0 0.0
        %1494 = vmatpush.msra.mxu0 0.0
        %1495 = vmatpush.msra.mxu0 0.0
        %1496 = vmatpush.msra.mxu0 0.0
        %1497 = vmatpush.msra.mxu0 0.0
        %1498 = vmatpush.msra.mxu0 0.0
        %1499 = vmatpush.msra.mxu0 0.0
        %1500 = vmatpush.msra.mxu0 0.0
        %1501 = vmatpush.msra.mxu0 0.0
        %1502 = vmatpush.msra.mxu0 0.0
        %1503 = vmatpush.msra.mxu0 0.0
        %1504 = vmatpush.msra.mxu0 0.0
        %1505 = vmatpush.msra.mxu0 %v1492
        %1506 = vmatpush.msra.mxu0 %v1491
        %1507 = vmatpush.msra.mxu0 %v1490
        %1508 = vmatpush.msra.mxu0 %v1489
        %1509 = vmatmul.f32.gmra.mxu0 %v254
        %v1510 = vpop.f32.mrf.mxu0
        %v1511 = vadd.f32 0.0, %v1510
        %1512 = vdwg.mxu0
        %s1513 = scalar_lea.vmem %s2, 224
        %v1514 = vld [vmem:[%s1513] sm:$0xff]
        %v1515 = vld [vmem:[%s1513 + $0x8] sm:$0xff]
        %v1516 = vld [vmem:[%s1513 + $0x10] sm:$0xff]
        %v1517 = vld [vmem:[%s1513 + $0x18] sm:$0xff]
        %1518 = vmatpush.msra.mxu0 0.0
        %1519 = vmatpush.msra.mxu0 0.0
        %1520 = vmatpush.msra.mxu0 0.0
        %1521 = vmatpush.msra.mxu0 0.0
        %1522 = vmatpush.msra.mxu0 0.0
        %1523 = vmatpush.msra.mxu0 0.0
        %1524 = vmatpush.msra.mxu0 0.0
        %1525 = vmatpush.msra.mxu0 0.0
        %1526 = vmatpush.msra.mxu0 0.0
        %1527 = vmatpush.msra.mxu0 0.0
        %1528 = vmatpush.msra.mxu0 0.0
        %1529 = vmatpush.msra.mxu0 0.0
        %1530 = vmatpush.msra.mxu0 %v1517
        %1531 = vmatpush.msra.mxu0 %v1516
        %1532 = vmatpush.msra.mxu0 %v1515
        %1533 = vmatpush.msra.mxu0 %v1514
        %1534 = vmatmul.f32.gmra.mxu0 %v254
        %v1535 = vpop.f32.mrf.mxu0
        %v1536 = vadd.f32 0.0, %v1535
        %1537 = vdwg.mxu0
        %s1538 = scalar_lea.vmem %s3, 224
        %v1539 = vld [vmem:[%s1538] sm:$0xff]
        %v1540 = vld [vmem:[%s1538 + $0x8] sm:$0xff]
        %v1541 = vld [vmem:[%s1538 + $0x10] sm:$0xff]
        %v1542 = vld [vmem:[%s1538 + $0x18] sm:$0xff]
        %1543 = vmatpush.msra.mxu0 0.0
        %1544 = vmatpush.msra.mxu0 0.0
        %1545 = vmatpush.msra.mxu0 0.0
        %1546 = vmatpush.msra.mxu0 0.0
        %1547 = vmatpush.msra.mxu0 0.0
        %1548 = vmatpush.msra.mxu0 0.0
        %1549 = vmatpush.msra.mxu0 0.0
        %1550 = vmatpush.msra.mxu0 0.0
        %1551 = vmatpush.msra.mxu0 0.0
        %1552 = vmatpush.msra.mxu0 0.0
        %1553 = vmatpush.msra.mxu0 0.0
        %1554 = vmatpush.msra.mxu0 0.0
        %1555 = vmatpush.msra.mxu0 %v1542
        %1556 = vmatpush.msra.mxu0 %v1541
        %1557 = vmatpush.msra.mxu0 %v1540
        %1558 = vmatpush.msra.mxu0 %v1539
        %1559 = vmatmul.f32.gmra.mxu0 %v254
        %v1560 = vpop.f32.mrf.mxu0
        %v1561 = vadd.f32 0.0, %v1560
        %1562 = vdwg.mxu0
        %v1564 = vsel %vm324, %v1511, 0
        %v1567 = vsel %vm324, %v1536, 0
        %1569 = vmatpush.xpose.msra.mxu0 0.0
        %1570 = vmatpush.xpose.msra.mxu0 0.0
        %1571 = vmatpush.xpose.msra.mxu0 0.0
        %1572 = vmatpush.xpose.msra.mxu0 0.0
        %1573 = vmatpush.xpose.msra.mxu0 0.0
        %1574 = vmatpush.xpose.msra.mxu0 0.0
        %1575 = vmatpush.xpose.msra.mxu0 0.0
        %1576 = vmatpush.xpose.msra.mxu0 0.0
        %1577 = vmatpush.xpose.msra.mxu0 0.0
        %1578 = vmatpush.xpose.msra.mxu0 0.0
        %1579 = vmatpush.xpose.msra.mxu0 0.0
        %1580 = vmatpush.xpose.msra.mxu0 0.0
        %1581 = vmatpush.xpose.msra.mxu0 0.0
        %1582 = vmatpush.xpose.msra.mxu0 0.0
        %1583 = vmatpush.xpose.msra.mxu0 0.0
        %1584 = vmatpush.xpose.msra.mxu0 %v1567
        %1585 = vmatmul.f32.gmra.mxu0 %v1564
        %v1586 = vpop.f32.mrf.mxu0
        %v1587 = vadd.f32 0.0, %v1586
        %1588 = vdwg.mxu0
        %v1589 = vsel %vm351, %v1587, -inf
        %1590 = vmax.xlane.f32.xlu0 %v1589
        %v1591 = vpop.xlane.xlu0 %1590
        %v1592 = vsub.f32 %v1587, %v1591
        %v1593 = vmul.f32 %v1592, 1.442695
        %v1594 = vpow.pop %v1593
        %v1595 = vsel %vm351, %v1594, 0.0
        %1596 = vadd.xlane.f32.xlu0 %v1595
        %v1597 = vpop.xlane.xlu0 %1596
        %v1598 = vrcp.pop %v1597
        %v1599 = vmul.f32 %v1597, %v1598
        %v1600 = vsub.f32 1.0, %v1599
        %v1601 = vmul.f32 %v1598, %v1600
        %v1602 = vadd.f32 %v1598, %v1601
        %vm1603 = vweird.f32 %v1597
        %vm1604 = vweird.f32 %v1598
        %vm1605 = vmor %vm1603, %vm1604
        %v1606 = vsel %vm1605, %v1598, %v1602
        %v1607 = vand.u32 2147483647, %v1597
        %vm1608 = vcmp.eq.f32.partialorder %v1607, 8.507059e+37
        %v1609 = vand.u32 %v1597, 2147483648
        %v1610 = vor.u32 1.1754944e-38, %v1609
        %v1611 = vsel %vm1608, %v1610, %v1606
        %v1612 = vmul.f32 %v1594, %v1611
        %v1614 = vsel %vm351, %v1612, 0
        %1616 = vmatpush.msra.mxu0 0.0
        %1617 = vmatpush.msra.mxu0 0.0
        %1618 = vmatpush.msra.mxu0 0.0
        %1619 = vmatpush.msra.mxu0 0.0
        %1620 = vmatpush.msra.mxu0 0.0
        %1621 = vmatpush.msra.mxu0 0.0
        %1622 = vmatpush.msra.mxu0 0.0
        %1623 = vmatpush.msra.mxu0 0.0
        %1624 = vmatpush.msra.mxu0 0.0
        %1625 = vmatpush.msra.mxu0 0.0
        %1626 = vmatpush.msra.mxu0 0.0
        %1627 = vmatpush.msra.mxu0 0.0
        %1628 = vmatpush.msra.mxu0 0.0
        %1629 = vmatpush.msra.mxu0 0.0
        %1630 = vmatpush.msra.mxu0 0.0
        %1631 = vmatpush.msra.mxu0 %v1561
        %1632 = vmatmul.f32.gmra.mxu0 %v1614
        %v1633 = vpop.f32.mrf.mxu0
        %v1634 = vadd.f32 0.0, %v1633
        %1635 = vdwg.mxu0
        %s1636 = scalar_lea.vmem %s4, 28
        %v1637 = vld [vmem:[%s1636] sm:$0xf]
        %v1639 = vsel %vm324, %v1634, 0
        %v1642 = vsel %vm553, %v1637, 0
        %1644 = vmatpush.msra.mxu0 0.0
        %1645 = vmatpush.msra.mxu0 0.0
        %1646 = vmatpush.msra.mxu0 0.0
        %1647 = vmatpush.msra.mxu0 0.0
        %1648 = vmatpush.msra.mxu0 0.0
        %1649 = vmatpush.msra.mxu0 0.0
        %1650 = vmatpush.msra.mxu0 0.0
        %1651 = vmatpush.msra.mxu0 0.0
        %1652 = vmatpush.msra.mxu0 0.0
        %1653 = vmatpush.msra.mxu0 0.0
        %1654 = vmatpush.msra.mxu0 0.0
        %1655 = vmatpush.msra.mxu0 0.0
        %1656 = vmatpush.msra.mxu0 0.0
        %1657 = vmatpush.msra.mxu0 0.0
        %1658 = vmatpush.msra.mxu0 0.0
        %1659 = vmatpush.msra.mxu0 %v1642
        %1660 = vmatmul.f32.gmra.mxu0 %v1639
        %v1661 = vpop.f32.mrf.mxu0
        %v1662 = vadd.f32 0.0, %v1661
        %1663 = vdwg.mxu0
        %v1664 = vadd.f32 %v1487, %v1662
        %v1665 = vld [vmem:[%s5] sm:$0x1]
        %v1667 = vperm.slane %v1665, 0
        %v1669 = vadd.f32 %v1664, %v1667
        %1670 = vst.msk [vmem:[%s242] sm:$0xff] %vm252, %v1669
        %s1671 = sand.u32 %s159, 1
        %s1672 = scalar_lea.sflag [#allocation3], %s1671
        %s1673 = sand.u32 %s159, 1
        %s1674 = smul.addr %s1673, 8
        %s1675 = scalar_lea.vmem [#allocation2], %s1674
        // Predicated region
        $region45: #{tpu_custom_call.1} parent=43 // pred_check
          %p1676 = pneg %p169
        $region46: #{tpu_custom_call.1} parent=43 // pred_check_branch
          %1678 = sbr.rel (%p1676) target = $region48
        $region47: #{tpu_custom_call.1} parent=43 // pred_region
          %1680 = vsyncadd %s1672, 0
          %s1681 = smul.addr %s20, 8
          %s1682 = scalar_lea.hbm %s6, %s1681
          %s1684 = sshll.u32 %s1675, 4
          %s1685 = int_to_ptr.vmem [resolvable:$true] %s1684
          %s1686 = sshll.u32 %s1682, 4
          %s1687 = int_to_ptr.hbm [resolvable:$true] %s1686
          %1689 = dma.vmem_to_hbm [thread:$0]  %s1685, 128, %s1687, %s1672
        $region48: #{tpu_custom_call.1} parent=43 // pred_fallthru
          _
      $region44: #{tpu_custom_call.1} parent=5 // pred_fallthru
        _
      %p1690 = scmp.le.s32.totalorder 2, %s15
      // Predicated region
      $region49: #{tpu_custom_call.1} parent=5 // pred_check
        %p1691 = pneg %p1690
      $region50: #{tpu_custom_call.1} parent=5 // pred_check_branch
        %1693 = sbr.rel (%p1691) target = $region52
      $region51: #{tpu_custom_call.1} parent=5 // pred_region
        %s1694 = ssub.s32 %s15, 2
        // Predicated region
        $region53: #{tpu_custom_call.1} parent=51 // pred_check
          %p1695 = pneg %p175
        $region54: #{tpu_custom_call.1} parent=51 // pred_check_branch
          %1697 = sbr.rel (%p1695) target = $region56
        $region55: #{tpu_custom_call.1} parent=51 // pred_region
          %s1698 = sand.u32 %s160, 1
          %s1699 = scalar_lea.sflag [#allocation3], %s1698
          %s1700 = sand.u32 %s160, 1
          %s1701 = smul.addr %s1700, 8
          %s1702 = scalar_lea.vmem [#allocation2], %s1701
          %1704 = dma.done %s1699, 128
        $region56: #{tpu_custom_call.1} parent=51 // pred_fallthru
          _
      $region52: #{tpu_custom_call.1} parent=5 // pred_fallthru
        _
    $region6: #{tpu_custom_call.1} parent=1 // loop_footer
      %s19 = sadd.s32 1, %s15
    $region7: #{tpu_custom_call.1} parent=1 // loop_footer_branch
      %14 = sbr.rel target = $region3
    $region8: #{tpu_custom_call.1} parent=1 // loop_exit
      _
    %1705 = vsyncpa [#allocation3], 1
    %s1706 = scalar_lea.sflag [#allocation3], 1
    %1707 = vsyncpa %s1706, 1

</llo_original>
